<compile_context>
chip_gen: v6e
topology: v6e:2x2x1
jax: 0.10.0
libtpu: 0.0.40
codegen_flags: <defaults>
</compile_context>

<pallas_src>
import math
import functools

import jax
import jax.numpy as jnp
from jax.experimental import pallas as pl
from jax.experimental.pallas import tpu as pltpu


# ----------------------------------------------------------------------------
# Hardware-aware sizing helpers
# ----------------------------------------------------------------------------
@functools.lru_cache(maxsize=None)
def _vmem_capacity_bytes():
    try:
        info = pltpu.get_tpu_info()
        cap = getattr(info, "vmem_capacity_bytes", None)
        if cap:
            return int(cap)
    except Exception:
        pass
    return 64 * 1024 * 1024          # conservative default (v7x per-TensorCore)


def _vmem_limit_bytes():
    cap = _vmem_capacity_bytes()
    return int(min(cap * 7 // 8, 120 * 1024 * 1024))


def _choose_query_tile(n, dx, de, cap_bytes):
    """Largest query-row tile whose live VMEM footprint fits ~45% of capacity."""
    budget = int(cap_bytes * 0.45)
    # per query row: ~5 live (n, dx) f32 temps + e12 (n, 2dx) f32 + bf16 copies
    # + double-buffered (n, de) f32 E in/out tiles.
    per_row = n * (28 * dx + 16 * de) + 64 * dx
    tq_max = max(1, budget // max(per_row, 1))
    if n <= tq_max:
        return n
    divs8 = [t for t in range(8, n + 1, 8) if n % t == 0]
    if not divs8:
        # TODO(synk): n with no multiple-of-8 divisor and too large for VMEM falls back
        # to full-row blocks (may spill); padding n would change pooling/mask semantics.
        return n
    fitting = [t for t in divs8 if t <= tq_max]
    return max(fitting) if fitting else min(divs8)


def _row_tile_and_pad(M, row_cap):
    """Row tile (multiple of 8 unless full) + padded row count for a cdiv grid."""
    if M <= row_cap:
        return M, M
    tr = max(8, (row_cap // 8) * 8)
    mp = int(pl.cdiv(M, tr)) * tr
    return tr, mp


# ----------------------------------------------------------------------------
# Fused NodeEdgeBlock kernel: grid = (bs, n // TQ)
# ----------------------------------------------------------------------------
def _attn_block_kernel(xq_ref, xk_ref, e_ref, yx_ref, mq_ref, mk_ref,
                       weo_ref, beo_ref, wq_ref, bq_ref, wkv_ref, bkv_ref,
                       wema_ref, bema_ref, wxo_ref, bxo_ref,
                       newe_ref, newx_ref, xpool_ref, epool_ref,
                       *, inv_sqrt_df, n, tq):
    bf = jnp.bfloat16
    dx = wq_ref.shape[0]

    xq = xq_ref[0]                      # (tq, dx)  query rows, f32
    xk = xk_ref[0]                      # (n, dx)   all rows (keys/values)
    e2d = e_ref[0]                      # (tq*n, de) edge rows, row r = qi*n + kj
    mq = mq_ref[0]                      # (tq, 1)
    mk = mk_ref[0]                      # (n, 1)
    yx = yx_ref[0]                      # (1, 2*dx) = [yx_add | yx_mul]
    yx_add = yx[:, :dx]
    yx_mul = yx[:, dx:]

    # Projections (bf16 operands, f32 accumulate).  Masking Q/K/V is unnecessary:
    # the key mask in the softmax and the final x/e masks reproduce the reference.
    q = (jnp.dot(xq.astype(bf), wq_ref[...],
                 preferred_element_type=jnp.float32) + bq_ref[...]) * inv_sqrt_df
    kv = jnp.dot(xk.astype(bf), wkv_ref[...],
                 preferred_element_type=jnp.float32) + bkv_ref[...]
    k = kv[:, :dx]
    v = kv[:, dx:]

    # Fused e_mul|e_add FiLM projections (E1/E2 never touch HBM).
    e12 = jnp.dot(e2d.astype(bf), wema_ref[...],
                  preferred_element_type=jnp.float32) + bema_ref[...]
    e1 = e12[:, :dx].reshape(tq, n, dx)
    e2 = e12[:, dx:].reshape(tq, n, dx)

    # Per-channel attention logits + edge FiLM.
    yf = (q[:, None, :] * k[None, :, :]) * (e1 + 1.0) + e2        # (tq, n, dx)

    # --- edge output path: y_e_add / y_e_mul already folded into per-batch W', b'.
    ne = jnp.dot(yf.reshape(tq * n, dx).astype(bf), weo_ref[0],
                 preferred_element_type=jnp.float32) + beo_ref[0]  # (tq*n, de)
    em = (mq[:, None, :] * mk[None, :, :]).reshape(tq * n, 1)      # pairwise mask
    newe_ref[0] = ne * em

    # --- node output path: masked per-channel softmax, normalize after the V-sum.
    mk3 = mk.reshape(1, n, 1)
    ym = jnp.where(mk3 > 0.0, yf, -1e30)
    mmax = jnp.max(ym, axis=1, keepdims=True)                      # (tq, 1, dx)
    p = jnp.exp(ym - mmax)
    s = jnp.sum(p, axis=1)                                         # (tq, dx)
    wv = jnp.sum(p * v[None, :, :], axis=1)                        # (tq, dx)
    wv = wv * pl.reciprocal(s, approx=True)
    nx = yx_add + (yx_mul + 1.0) * wv
    nx = jnp.dot(nx.astype(bf), wxo_ref[...],
                 preferred_element_type=jnp.float32) + bxo_ref[...]
    newx_ref[0] = nx * mq

    # --- one-pass pooling partials (sum | min | max | sum-of-squares) ---
    xpool_ref[0, 0] = jnp.concatenate(
        [jnp.sum(xq, axis=0, keepdims=True),
         jnp.min(xq, axis=0, keepdims=True),
         jnp.max(xq, axis=0, keepdims=True),
         jnp.sum(xq * xq, axis=0, keepdims=True)], axis=0)         # (4, dx)
    epool_ref[0, 0] = jnp.concatenate(
        [jnp.sum(e2d, axis=0, keepdims=True),
         jnp.min(e2d, axis=0, keepdims=True),
         jnp.max(e2d, axis=0, keepdims=True),
         jnp.sum(e2d * e2d, axis=0, keepdims=True)], axis=0)       # (4, de)


def attn_edge_block(X, Eflat, nm, yx_cond, w_eo_b, b_eo_b,
                    w_q, b_q, w_kv, b_kv, w_ema, b_ema, w_xo, b_xo, df):
    bs, n, dx = X.shape
    de = Eflat.shape[-1]
    cap = _vmem_capacity_bytes()
    tq = _choose_query_tile(n, dx, de, cap)
    n_qt = max(1, n // tq)

    kern = functools.partial(_attn_block_kernel,
                             inv_sqrt_df=1.0 / math.sqrt(df), n=n, tq=tq)

    in_specs = [
        pl.BlockSpec((1, tq, dx),     lambda b, i: (b, i, 0)),   # X (query rows)
        pl.BlockSpec((1, n, dx),      lambda b, i: (b, 0, 0)),   # X (key/value rows)
        pl.BlockSpec((1, tq * n, de), lambda b, i: (b, i, 0)),   # E tile (flattened)
        pl.BlockSpec((1, 1, 2 * dx),  lambda b, i: (b, 0, 0)),   # [yx_add | yx_mul]
        pl.BlockSpec((1, tq, 1),      lambda b, i: (b, i, 0)),   # query mask
        pl.BlockSpec((1, n, 1),       lambda b, i: (b, 0, 0)),   # key mask
        pl.BlockSpec((1, dx, de),     lambda b, i: (b, 0, 0)),   # folded e_out W'
        pl.BlockSpec((1, 1, de),      lambda b, i: (b, 0, 0)),   # folded e_out b'
        pl.BlockSpec((dx, dx),        lambda b, i: (0, 0)),      # w_q
        pl.BlockSpec((1, dx),         lambda b, i: (0, 0)),      # b_q
        pl.BlockSpec((dx, 2 * dx),    lambda b, i: (0, 0)),      # w_kv
        pl.BlockSpec((1, 2 * dx),     lambda b, i: (0, 0)),      # b_kv
        pl.BlockSpec((de, 2 * dx),    lambda b, i: (0, 0)),      # w_e_mul|e_add
        pl.BlockSpec((1, 2 * dx),     lambda b, i: (0, 0)),      # b_e_mul|e_add
        pl.BlockSpec((dx, dx),        lambda b, i: (0, 0)),      # w_x_out
        pl.BlockSpec((1, dx),         lambda b, i: (0, 0)),      # b_x_out
    ]
    out_specs = [
        pl.BlockSpec((1, tq * n, de), lambda b, i: (b, i, 0)),     # newE (flat)
        pl.BlockSpec((1, tq, dx),     lambda b, i: (b, i, 0)),     # newX
        pl.BlockSpec((1, 1, 4, dx),   lambda b, i: (b, i, 0, 0)),  # X pooling partial
        pl.BlockSpec((1, 1, 4, de),   lambda b, i: (b, i, 0, 0)),  # E pooling partial
    ]
    out_shape = (
        jax.ShapeDtypeStruct((bs, n * n, de), jnp.float32),
        jax.ShapeDtypeStruct((bs, n, dx), jnp.float32),
        jax.ShapeDtypeStruct((bs, n_qt, 4, dx), jnp.float32),
        jax.ShapeDtypeStruct((bs, n_qt, 4, de), jnp.float32),
    )
    return pl.pallas_call(
        kern,
        grid=(bs, n_qt),
        in_specs=in_specs,
        out_specs=out_specs,
        out_shape=out_shape,
        compiler_params=pltpu.CompilerParams(
            dimension_semantics=("parallel", "parallel"),
            vmem_limit_bytes=_vmem_limit_bytes()),
    )(X, X, Eflat, yx_cond, nm, nm, w_eo_b, b_eo_b,
      w_q, b_q, w_kv, b_kv, w_ema, b_ema, w_xo, b_xo)


# ----------------------------------------------------------------------------
# Fused  LN(x + r) -> Linear -> ReLU -> Linear -> LN(residual)  chain, row-tiled.
# ----------------------------------------------------------------------------
def _chain_kernel(x_ref, r_ref, g1_ref, b1_ref, w1_ref, c1_ref, w2_ref, c2_ref,
                  g2_ref, b2_ref, o_ref, *, eps):
    bf = jnp.bfloat16
    z = x_ref[...] + r_ref[...]
    mu = jnp.mean(z, axis=-1, keepdims=True)
    var = jnp.mean((z - mu) ** 2, axis=-1, keepdims=True)
    zn = (z - mu) * jax.lax.rsqrt(var + eps) * g1_ref[...] + b1_ref[...]

    h = jnp.maximum(jnp.dot(zn.astype(bf), w1_ref[...],
                            preferred_element_type=jnp.float32) + c1_ref[...], 0.0)
    f = jnp.dot(h.astype(bf), w2_ref[...],
                preferred_element_type=jnp.float32) + c2_ref[...]

    z2 = zn + f
    mu2 = jnp.mean(z2, axis=-1, keepdims=True)
    var2 = jnp.mean((z2 - mu2) ** 2, axis=-1, keepdims=True)
    o_ref[...] = (z2 - mu2) * jax.lax.rsqrt(var2 + eps) * g2_ref[...] + b2_ref[...]


def residual_ln_ffn_ln(x2d, r2d, ln1, w1, c1, w2, c2, ln2, eps=1e-5, row_cap=1024):
    M, d = x2d.shape
    g1, b1 = ln1
    g2, b2 = ln2
    w1b = w1.astype(jnp.bfloat16)
    w2b = w2.astype(jnp.bfloat16)

    TR, Mp = _row_tile_and_pad(M, row_cap)
    if Mp != M:                     # pad rows so TR divides (no divisor requirement)
        x2d = jnp.pad(x2d, ((0, Mp - M), (0, 0)))
        r2d = jnp.pad(r2d, ((0, Mp - M), (0, 0)))

    row = pl.BlockSpec((TR, d), lambda i: (i, 0))
    cst = lambda a: pl.BlockSpec(a.shape, lambda i: (0, 0))
    out = pl.pallas_call(
        functools.partial(_chain_kernel, eps=eps),
        grid=(Mp // TR,),
        in_specs=[row, row, cst(g1), cst(b1), cst(w1b), cst(c1),
                  cst(w2b), cst(c2), cst(g2), cst(b2)],
        out_specs=pl.BlockSpec((TR, d), lambda i: (i, 0)),
        out_shape=jax.ShapeDtypeStruct((Mp, d), jnp.float32),
        compiler_params=pltpu.CompilerParams(
            dimension_semantics=("parallel",),
            vmem_limit_bytes=_vmem_limit_bytes()),
    )(x2d, r2d, g1, b1, w1b, c1, w2b, c2, g2, b2)
    return out[:M] if Mp != M else out


# ----------------------------------------------------------------------------
# Global-feature head:  new_y = y_out( y_y + Xtoy(pooled X) + Etoy(pooled E) )
# ----------------------------------------------------------------------------
def _y_head_kernel(yy_ref, xp_ref, ep_ref, wx_ref, bx_ref, we_ref, be_ref,
                   w1_ref, c1_ref, w2_ref, c2_ref, o_ref):
    t = (yy_ref[...]
         + jnp.dot(xp_ref[...], wx_ref[...], preferred_element_type=jnp.float32) + bx_ref[...]
         + jnp.dot(ep_ref[...], we_ref[...], preferred_element_type=jnp.float32) + be_ref[...])
    h = jnp.maximum(jnp.dot(t, w1_ref[...],
                            preferred_element_type=jnp.float32) + c1_ref[...], 0.0)
    o_ref[...] = jnp.dot(h, w2_ref[...], preferred_element_type=jnp.float32) + c2_ref[...]


def y_head(y_y, xpool_f, epool_f, xy, ey, yo1, yo2):
    bs, dy = y_y.shape
    return pl.pallas_call(
        _y_head_kernel,
        out_shape=jax.ShapeDtypeStruct((bs, dy), jnp.float32),
    )(y_y, xpool_f, epool_f, xy[0], xy[1], ey[0], ey[1],
      yo1[0], yo1[1], yo2[0], yo2[1])


# ----------------------------------------------------------------------------
# Parameters (deterministic init, torch-Linear-like uniform(-1/sqrt(fan_in), .))
# Weights stored as (fan_in, fan_out) so kernels compute x @ W + b.
# ----------------------------------------------------------------------------
def init_params(key, dx, de, dy, dim_ffX, dim_ffE, dim_ffy):
    keys = iter(jax.random.split(key, 64))

    def lin_init(fan_in, fan_out):
        bound = 1.0 / math.sqrt(fan_in)
        w = jax.random.uniform(next(keys), (fan_in, fan_out), jnp.float32, -bound, bound)
        b = jax.random.uniform(next(keys), (1, fan_out), jnp.float32, -bound, bound)
        return (w, b)

    def ln_init(d):
        return (jnp.ones((1, d), jnp.float32), jnp.zeros((1, d), jnp.float32))

    p = {}
    # NodeEdgeBlock
    p['q'] = lin_init(dx, dx); p['k'] = lin_init(dx, dx); p['v'] = lin_init(dx, dx)
    p['e_add'] = lin_init(de, dx); p['e_mul'] = lin_init(de, dx)
    p['y_e_mul'] = lin_init(dy, dx); p['y_e_add'] = lin_init(dy, dx)
    p['y_x_mul'] = lin_init(dy, dx); p['y_x_add'] = lin_init(dy, dx)
    p['y_y'] = lin_init(dy, dy)
    p['x_y'] = lin_init(4 * dx, dy)           # Xtoy
    p['e_y'] = lin_init(4 * de, dy)           # Etoy
    p['x_out'] = lin_init(dx, dx); p['e_out'] = lin_init(dx, de)
    p['y_out1'] = lin_init(dy, dy); p['y_out2'] = lin_init(dy, dy)
    # XEyTransformerLayer
    p['linX1'] = lin_init(dx, dim_ffX); p['linX2'] = lin_init(dim_ffX, dx)
    p['normX1'] = ln_init(dx); p['normX2'] = ln_init(dx)
    p['linE1'] = lin_init(de, dim_ffE); p['linE2'] = lin_init(dim_ffE, de)
    p['normE1'] = ln_init(de); p['normE2'] = ln_init(de)
    p['lin_y1'] = lin_init(dy, dim_ffy); p['lin_y2'] = lin_init(dim_ffy, dy)
    p['norm_y1'] = ln_init(dy); p['norm_y2'] = ln_init(dy)
    return p


# ----------------------------------------------------------------------------
# Forward pass (Pallas): XEyTransformerLayer.forward
# ----------------------------------------------------------------------------
def xey_transformer_layer(params, X, E, y, node_mask, n_head, eps=1e-5):
    bs, n, dx = X.shape
    de = E.shape[-1]
    df = dx // n_head
    bf16 = jnp.bfloat16

    nm = node_mask.astype(jnp.float32).reshape(bs, n, 1)

    # Fused y-conditioning projection [y_e_add|y_e_mul|y_x_add|y_x_mul|y_y] (tiny: XLA).
    w_yc = jnp.concatenate([params['y_e_add'][0], params['y_e_mul'][0],
                            params['y_x_add'][0], params['y_x_mul'][0],
                            params['y_y'][0]], axis=1)
    b_yc = jnp.concatenate([params['y_e_add'][1], params['y_e_mul'][1],
                            params['y_x_add'][1], params['y_x_mul'][1],
                            params['y_y'][1]], axis=1)
    ycond = jnp.dot(y, w_yc, precision=jax.lax.Precision.HIGHEST) + b_yc[0]
    ye_add = ycond[:, 0 * dx:1 * dx]
    ye_mul = ycond[:, 1 * dx:2 * dx]
    yx_cond = ycond[:, 2 * dx:4 * dx].reshape(bs, 1, 2 * dx)      # [yx_add | yx_mul]
    y_y = ycond[:, 4 * dx:]

    # Fold the edge FiLM scale/shift into per-batch e_out weights (once per batch).
    w_eo, b_eo = params['e_out']
    w_eo_b = (w_eo[None, :, :] * (ye_mul + 1.0)[:, :, None]).astype(bf16)  # (bs,dx,de)
    b_eo_b = (b_eo + jnp.dot(ye_add, w_eo)).reshape(bs, 1, de)             # (bs,1,de)

    # Fused (bf16) projection weights.
    w_q = params['q'][0].astype(bf16); b_q = params['q'][1]
    w_kv = jnp.concatenate([params['k'][0], params['v'][0]], axis=1).astype(bf16)
    b_kv = jnp.concatenate([params['k'][1], params['v'][1]], axis=1)
    w_ema = jnp.concatenate([params['e_mul'][0], params['e_add'][0]], axis=1).astype(bf16)
    b_ema = jnp.concatenate([params['e_mul'][1], params['e_add'][1]], axis=1)
    w_xo = params['x_out'][0].astype(bf16); b_xo = params['x_out'][1]

    Eflat = E.reshape(bs, n * n, de)

    # Fused NodeEdgeBlock (query-row tiled) + per-tile pooling partials.
    newEflat, newX, xpool_p, epool_p = attn_edge_block(
        X, Eflat, nm, yx_cond, w_eo_b, b_eo_b,
        w_q, b_q, w_kv, b_kv, w_ema, b_ema, w_xo, b_xo, df)

    # Finalize pooled [mean|min|max|std] from one-pass partials (tiny wrapper JAX).
    def finalize(parts, count):
        s = parts[:, :, 0].sum(axis=1)
        mn = parts[:, :, 1].min(axis=1)
        mx = parts[:, :, 2].max(axis=1)
        ss = parts[:, :, 3].sum(axis=1)
        mean = s / count
        var = jnp.maximum(ss - count * mean * mean, 0.0) / (count - 1)
        return jnp.concatenate([mean, mn, mx, jnp.sqrt(var)], axis=-1)

    xpool_f = finalize(xpool_p, n)           # (bs, 4*dx)
    epool_f = finalize(epool_p, n * n)       # (bs, 4*de)

    new_y = y_head(y_y, xpool_f, epool_f,
                   params['x_y'], params['e_y'], params['y_out1'], params['y_out2'])

    # Fused residual + LN + FFN + LN chains (dropout = identity).
    Xo = residual_ln_ffn_ln(X.reshape(bs * n, dx), newX.reshape(bs * n, dx),
                            params['normX1'], *params['linX1'], *params['linX2'],
                            params['normX2'], eps, row_cap=1024)
    Eo = residual_ln_ffn_ln(Eflat.reshape(bs * n * n, de),
                            newEflat.reshape(bs * n * n, de),
                            params['normE1'], *params['linE1'], *params['linE2'],
                            params['normE2'], eps, row_cap=2048)
    yo = residual_ln_ffn_ln(y, new_y,
                            params['norm_y1'], *params['lin_y1'], *params['lin_y2'],
                            params['norm_y2'], eps, row_cap=1024)

    return Xo.reshape(bs, n, dx), Eo.reshape(bs, n, n, de), yo


# ----------------------------------------------------------------------------
# Pure-JAX reference (mirrors the PyTorch code, incl. explicit head reshapes)
# ----------------------------------------------------------------------------
def reference_forward(params, X, E, y, node_mask, n_head, eps=1e-5):
    P = jax.lax.Precision.HIGHEST

    def lin(x, wb):
        w, b = wb
        return jnp.dot(x, w, precision=P) + b[0]

    def ln(z, gb):
        g, b = gb
        mu = z.mean(axis=-1, keepdims=True)
        var = ((z - mu) ** 2).mean(axis=-1, keepdims=True)
        return (z - mu) / jnp.sqrt(var + eps) * g[0] + b[0]

    bs, n, dx = X.shape
    de = E.shape[-1]
    df = dx // n_head
    node_mask = node_mask.astype(jnp.float32)
    x_mask = node_mask[:, :, None]
    e_mask1 = x_mask[:, :, None, :]
    e_mask2 = x_mask[:, None, :, :]

    Q = lin(X, params['q']) * x_mask
    K = lin(X, params['k']) * x_mask
    Qh = Q.reshape(bs, n, n_head, df)[:, :, None]
    Kh = K.reshape(bs, n, n_head, df)[:, None]
    Y = Qh * Kh / math.sqrt(df)
    E1 = (lin(E, params['e_mul']) * e_mask1 * e_mask2).reshape(bs, n, n, n_head, df)
    E2 = (lin(E, params['e_add']) * e_mask1 * e_mask2).reshape(bs, n, n, n_head, df)
    Y = Y * (E1 + 1.0) + E2
    newE = Y.reshape(bs, n, n, dx)
    ye1 = lin(y, params['y_e_add'])[:, None, None, :]
    ye2 = lin(y, params['y_e_mul'])[:, None, None, :]
    newE = ye1 + (ye2 + 1.0) * newE
    newE = lin(newE, params['e_out']) * e_mask1 * e_mask2

    smask = jnp.broadcast_to(node_mask[:, None, :, None, None],
                             (bs, n, n, n_head, df))
    attn = jax.nn.softmax(jnp.where(smask > 0, Y, -jnp.inf), axis=2)
    V = lin(X, params['v']) * x_mask
    Vh = V.reshape(bs, n, n_head, df)[:, None]
    wV = (attn * Vh).sum(axis=2).reshape(bs, n, dx)
    yx1 = lin(y, params['y_x_add'])[:, None, :]
    yx2 = lin(y, params['y_x_mul'])[:, None, :]
    newX = lin(yx1 + (yx2 + 1.0) * wV, params['x_out']) * x_mask

    yy = lin(y, params['y_y'])
    xstd = jnp.sqrt(((X - X.mean(axis=1, keepdims=True)) ** 2).sum(axis=1) / (n - 1))
    x_y = lin(jnp.concatenate([X.mean(1), X.min(1), X.max(1), xstd], -1), params['x_y'])
    Er = E.reshape(bs, n * n, de)
    estd = jnp.sqrt(((Er - Er.mean(axis=1, keepdims=True)) ** 2).sum(axis=1) / (n * n - 1))
    e_y = lin(jnp.concatenate([Er.mean(1), Er.min(1), Er.max(1), estd], -1), params['e_y'])
    new_y = yy + x_y + e_y
    new_y = lin(jax.nn.relu(lin(new_y, params['y_out1'])), params['y_out2'])

    Xn = ln(X + newX, params['normX1'])
    En = ln(E + newE, params['normE1'])
    yn = ln(y + new_y, params['norm_y1'])
    Xo = ln(Xn + lin(jax.nn.relu(lin(Xn, params['linX1'])), params['linX2']), params['normX2'])
    Eo = ln(En + lin(jax.nn.relu(lin(En, params['linE1'])), params['linE2']), params['normE2'])
    yo = ln(yn + lin(jax.nn.relu(lin(yn, params['lin_y1'])), params['lin_y2']), params['norm_y2'])
    return Xo, Eo, yo


# ----------------------------------------------------------------------------
if __name__ == "__main__":
    bs, n, dx, de, dy, n_head = 2, 8, 32, 16, 16, 4
    dim_ffX, dim_ffE, dim_ffy = 64, 32, 64

    key = jax.random.PRNGKey(0)
    kp, kx, ke, ky = jax.random.split(key, 4)

    params = init_params(kp, dx, de, dy, dim_ffX, dim_ffE, dim_ffy)

    X = jax.random.normal(kx, (bs, n, dx), jnp.float32)
    E = jax.random.normal(ke, (bs, n, n, de), jnp.float32)
    y = jax.random.normal(ky, (bs, dy), jnp.float32)
    node_mask = jnp.ones((bs, n), jnp.float32).at[1, 6:].set(0.0)   # mask 2 nodes in batch 1

    Xo, Eo, yo = xey_transformer_layer(params, X, E, y, node_mask, n_head)
    jax.block_until_ready((Xo, Eo, yo))

    assert Xo.shape == (bs, n, dx) and Eo.shape == (bs, n, n, de) and yo.shape == (bs, dy)

    Xr, Er, yr = reference_forward(params, X, E, y, node_mask, n_head)
    for got, ref in ((Xo, Xr), (Eo, Er), (yo, yr)):
        assert jnp.allclose(got, ref, rtol=5e-2, atol=5e-2), \
            f"mismatch: max abs diff {jnp.max(jnp.abs(got - ref))}"

    print("KERNEL_OK")
</pallas_src>

<mosaic_0001>
module attributes {stable_mosaic.version = 11 : i64} {
  func.func @_attn_block_kernel(%arg0: i32, %arg1: i32, %arg2: memref<1x8x32xf32, #tpu.memory_space<vmem>>, %arg3: memref<1x8x32xf32, #tpu.memory_space<vmem>>, %arg4: memref<1x64x16xf32, #tpu.memory_space<vmem>>, %arg5: memref<1x1x64xf32, #tpu.memory_space<vmem>>, %arg6: memref<1x8x1xf32, #tpu.memory_space<vmem>>, %arg7: memref<1x8x1xf32, #tpu.memory_space<vmem>>, %arg8: memref<1x32x16xbf16, #tpu.memory_space<vmem>>, %arg9: memref<1x1x16xf32, #tpu.memory_space<vmem>>, %arg10: memref<32x32xbf16, #tpu.memory_space<vmem>>, %arg11: memref<1x32xf32, #tpu.memory_space<vmem>>, %arg12: memref<32x64xbf16, #tpu.memory_space<vmem>>, %arg13: memref<1x64xf32, #tpu.memory_space<vmem>>, %arg14: memref<16x64xbf16, #tpu.memory_space<vmem>>, %arg15: memref<1x64xf32, #tpu.memory_space<vmem>>, %arg16: memref<32x32xbf16, #tpu.memory_space<vmem>>, %arg17: memref<1x32xf32, #tpu.memory_space<vmem>>, %arg18: memref<1x64x16xf32, #tpu.memory_space<vmem>>, %arg19: memref<1x8x32xf32, #tpu.memory_space<vmem>>, %arg20: memref<1x1x4x32xf32, #tpu.memory_space<vmem>>, %arg21: memref<1x1x4x16xf32, #tpu.memory_space<vmem>>) attributes {dimension_semantics = [#tpu.dimension_semantics<parallel>, #tpu.dimension_semantics<parallel>], iteration_bounds = array<i64: 2, 1>, scalar_prefetch = 0 : i64, scratch_operands = 0 : i64, tpu.core_type = #tpu.core_type<tc>, window_params = [{transform_indices = @transform_0, window_bounds = array<i64: 1, 8, 32>}, {transform_indices = @transform_1, window_bounds = array<i64: 1, 8, 32>}, {transform_indices = @transform_2, window_bounds = array<i64: 1, 64, 16>}, {transform_indices = @transform_3, window_bounds = array<i64: 1, 1, 64>}, {transform_indices = @transform_4, window_bounds = array<i64: 1, 8, 1>}, {transform_indices = @transform_5, window_bounds = array<i64: 1, 8, 1>}, {transform_indices = @transform_6, window_bounds = array<i64: 1, 32, 16>}, {transform_indices = @transform_7, window_bounds = array<i64: 1, 1, 16>}, {pipeline_mode = #tpu.pipeline_mode<synchronous>, transform_indices = @transform_8, window_bounds = array<i64: 32, 32>}, {pipeline_mode = #tpu.pipeline_mode<synchronous>, transform_indices = @transform_9, window_bounds = array<i64: 1, 32>}, {pipeline_mode = #tpu.pipeline_mode<synchronous>, transform_indices = @transform_10, window_bounds = array<i64: 32, 64>}, {pipeline_mode = #tpu.pipeline_mode<synchronous>, transform_indices = @transform_11, window_bounds = array<i64: 1, 64>}, {pipeline_mode = #tpu.pipeline_mode<synchronous>, transform_indices = @transform_12, window_bounds = array<i64: 16, 64>}, {pipeline_mode = #tpu.pipeline_mode<synchronous>, transform_indices = @transform_13, window_bounds = array<i64: 1, 64>}, {pipeline_mode = #tpu.pipeline_mode<synchronous>, transform_indices = @transform_14, window_bounds = array<i64: 32, 32>}, {pipeline_mode = #tpu.pipeline_mode<synchronous>, transform_indices = @transform_15, window_bounds = array<i64: 1, 32>}, {transform_indices = @transform_16, window_bounds = array<i64: 1, 64, 16>}, {transform_indices = @transform_17, window_bounds = array<i64: 1, 8, 32>}, {transform_indices = @transform_18, window_bounds = array<i64: 1, 1, 4, 32>}, {transform_indices = @transform_19, window_bounds = array<i64: 1, 1, 4, 16>}]} {
    %c0 = arith.constant 0 : index
    %c0_0 = arith.constant 0 : index
    %c0_1 = arith.constant 0 : index
    %0 = vector.load %arg2[%c0, %c0_0, %c0_1] : memref<1x8x32xf32, #tpu.memory_space<vmem>>, vector<1x8x32xf32>
    %1 = vector.shape_cast %0 : vector<1x8x32xf32> to vector<8x32xf32>
    %c0_2 = arith.constant 0 : index
    %c0_3 = arith.constant 0 : index
    %c0_4 = arith.constant 0 : index
    %2 = vector.load %arg3[%c0_2, %c0_3, %c0_4] : memref<1x8x32xf32, #tpu.memory_space<vmem>>, vector<1x8x32xf32>
    %3 = vector.shape_cast %2 : vector<1x8x32xf32> to vector<8x32xf32>
    %c0_5 = arith.constant 0 : index
    %c0_6 = arith.constant 0 : index
    %c0_7 = arith.constant 0 : index
    %4 = vector.load %arg4[%c0_5, %c0_6, %c0_7] : memref<1x64x16xf32, #tpu.memory_space<vmem>>, vector<1x64x16xf32>
    %5 = vector.shape_cast %4 : vector<1x64x16xf32> to vector<64x16xf32>
    %c0_8 = arith.constant 0 : index
    %c0_9 = arith.constant 0 : index
    %c0_10 = arith.constant 0 : index
    %6 = vector.load %arg6[%c0_8, %c0_9, %c0_10] : memref<1x8x1xf32, #tpu.memory_space<vmem>>, vector<1x8x1xf32>
    %7 = vector.shape_cast %6 : vector<1x8x1xf32> to vector<8x1xf32>
    %c0_11 = arith.constant 0 : index
    %c0_12 = arith.constant 0 : index
    %c0_13 = arith.constant 0 : index
    %8 = vector.load %arg7[%c0_11, %c0_12, %c0_13] : memref<1x8x1xf32, #tpu.memory_space<vmem>>, vector<1x8x1xf32>
    %9 = vector.shape_cast %8 : vector<1x8x1xf32> to vector<8x1xf32>
    %c0_14 = arith.constant 0 : index
    %c0_15 = arith.constant 0 : index
    %c0_16 = arith.constant 0 : index
    %10 = vector.load %arg5[%c0_14, %c0_15, %c0_16] : memref<1x1x64xf32, #tpu.memory_space<vmem>>, vector<1x1x64xf32>
    %11 = vector.shape_cast %10 : vector<1x1x64xf32> to vector<1x64xf32>
    %12 = vector.extract_strided_slice %11 {offsets = [0, 0], sizes = [1, 32], strides = [1, 1]} : vector<1x64xf32> to vector<1x32xf32>
    %13 = vector.extract_strided_slice %11 {offsets = [0, 32], sizes = [1, 32], strides = [1, 1]} : vector<1x64xf32> to vector<1x32xf32>
    %14 = arith.truncf %1 : vector<8x32xf32> to vector<8x32xbf16>
    %c0_17 = arith.constant 0 : index
    %c0_18 = arith.constant 0 : index
    %15 = vector.load %arg10[%c0_17, %c0_18] : memref<32x32xbf16, #tpu.memory_space<vmem>>, vector<32x32xbf16>
    %cst = arith.constant dense<0.000000e+00> : vector<8x32xf32>
    %16 = tpu.matmul %14, %15, %cst {dimension_numbers = #tpu.dot_dimension_numbers<[1], [0], [0], [1], [0, 0, 1, 1], [], []>} : vector<8x32xbf16>, vector<32x32xbf16>, vector<8x32xf32> -> vector<8x32xf32>
    %c0_19 = arith.constant 0 : index
    %c0_20 = arith.constant 0 : index
    %17 = vector.load %arg11[%c0_19, %c0_20] : memref<1x32xf32, #tpu.memory_space<vmem>>, vector<1x32xf32>
    %18 = vector.broadcast %17 : vector<1x32xf32> to vector<8x32xf32>
    %19 = arith.addf %16, %18 : vector<8x32xf32>
    %cst_21 = arith.constant 0.353553385 : f32
    %20 = vector.broadcast %cst_21 : f32 to vector<8x32xf32>
    %21 = arith.mulf %19, %20 : vector<8x32xf32>
    %22 = arith.truncf %3 : vector<8x32xf32> to vector<8x32xbf16>
    %c0_22 = arith.constant 0 : index
    %c0_23 = arith.constant 0 : index
    %23 = vector.load %arg12[%c0_22, %c0_23] : memref<32x64xbf16, #tpu.memory_space<vmem>>, vector<32x64xbf16>
    %cst_24 = arith.constant dense<0.000000e+00> : vector<8x64xf32>
    %24 = tpu.matmul %22, %23, %cst_24 {dimension_numbers = #tpu.dot_dimension_numbers<[1], [0], [0], [1], [0, 0, 1, 1], [], []>} : vector<8x32xbf16>, vector<32x64xbf16>, vector<8x64xf32> -> vector<8x64xf32>
    %c0_25 = arith.constant 0 : index
    %c0_26 = arith.constant 0 : index
    %25 = vector.load %arg13[%c0_25, %c0_26] : memref<1x64xf32, #tpu.memory_space<vmem>>, vector<1x64xf32>
    %26 = vector.broadcast %25 : vector<1x64xf32> to vector<8x64xf32>
    %27 = arith.addf %24, %26 : vector<8x64xf32>
    %28 = vector.extract_strided_slice %27 {offsets = [0, 0], sizes = [8, 32], strides = [1, 1]} : vector<8x64xf32> to vector<8x32xf32>
    %29 = vector.extract_strided_slice %27 {offsets = [0, 32], sizes = [8, 32], strides = [1, 1]} : vector<8x64xf32> to vector<8x32xf32>
    %30 = arith.truncf %5 : vector<64x16xf32> to vector<64x16xbf16>
    %c0_27 = arith.constant 0 : index
    %c0_28 = arith.constant 0 : index
    %31 = vector.load %arg14[%c0_27, %c0_28] : memref<16x64xbf16, #tpu.memory_space<vmem>>, vector<16x64xbf16>
    %cst_29 = arith.constant dense<0.000000e+00> : vector<64x64xf32>
    %32 = tpu.matmul %30, %31, %cst_29 {dimension_numbers = #tpu.dot_dimension_numbers<[1], [0], [0], [1], [0, 0, 1, 1], [], []>} : vector<64x16xbf16>, vector<16x64xbf16>, vector<64x64xf32> -> vector<64x64xf32>
    %c0_30 = arith.constant 0 : index
    %c0_31 = arith.constant 0 : index
    %33 = vector.load %arg15[%c0_30, %c0_31] : memref<1x64xf32, #tpu.memory_space<vmem>>, vector<1x64xf32>
    %34 = vector.broadcast %33 : vector<1x64xf32> to vector<64x64xf32>
    %35 = arith.addf %32, %34 : vector<64x64xf32>
    %36 = vector.extract_strided_slice %35 {offsets = [0, 0], sizes = [64, 32], strides = [1, 1]} : vector<64x64xf32> to vector<64x32xf32>
    %37 = vector.shape_cast %36 : vector<64x32xf32> to vector<8x8x32xf32>
    %38 = vector.extract_strided_slice %35 {offsets = [0, 32], sizes = [64, 32], strides = [1, 1]} : vector<64x64xf32> to vector<64x32xf32>
    %39 = vector.shape_cast %38 : vector<64x32xf32> to vector<8x8x32xf32>
    %40 = vector.shape_cast %21 : vector<8x32xf32> to vector<8x1x32xf32>
    %41 = vector.shape_cast %28 : vector<8x32xf32> to vector<1x8x32xf32>
    %42 = vector.broadcast %40 : vector<8x1x32xf32> to vector<8x8x32xf32>
    %43 = vector.broadcast %41 : vector<1x8x32xf32> to vector<8x8x32xf32>
    %44 = arith.mulf %42, %43 : vector<8x8x32xf32>
    %cst_32 = arith.constant 1.000000e+00 : f32
    %45 = vector.broadcast %cst_32 : f32 to vector<8x8x32xf32>
    %46 = arith.addf %37, %45 : vector<8x8x32xf32>
    %47 = arith.mulf %44, %46 : vector<8x8x32xf32>
    %48 = arith.addf %47, %39 : vector<8x8x32xf32>
    %49 = vector.shape_cast %48 : vector<8x8x32xf32> to vector<64x32xf32>
    %50 = arith.truncf %49 : vector<64x32xf32> to vector<64x32xbf16>
    %c0_33 = arith.constant 0 : index
    %c0_34 = arith.constant 0 : index
    %c0_35 = arith.constant 0 : index
    %51 = vector.load %arg8[%c0_33, %c0_34, %c0_35] : memref<1x32x16xbf16, #tpu.memory_space<vmem>>, vector<1x32x16xbf16>
    %52 = vector.shape_cast %51 : vector<1x32x16xbf16> to vector<32x16xbf16>
    %cst_36 = arith.constant dense<0.000000e+00> : vector<64x16xf32>
    %53 = tpu.matmul %50, %52, %cst_36 {dimension_numbers = #tpu.dot_dimension_numbers<[1], [0], [0], [1], [0, 0, 1, 1], [], []>} : vector<64x32xbf16>, vector<32x16xbf16>, vector<64x16xf32> -> vector<64x16xf32>
    %c0_37 = arith.constant 0 : index
    %c0_38 = arith.constant 0 : index
    %c0_39 = arith.constant 0 : index
    %54 = vector.load %arg9[%c0_37, %c0_38, %c0_39] : memref<1x1x16xf32, #tpu.memory_space<vmem>>, vector<1x1x16xf32>
    %55 = vector.shape_cast %54 : vector<1x1x16xf32> to vector<1x16xf32>
    %56 = vector.broadcast %55 : vector<1x16xf32> to vector<64x16xf32>
    %57 = arith.addf %53, %56 : vector<64x16xf32>
    %58 = vector.shape_cast %7 : vector<8x1xf32> to vector<8x1x1xf32>
    %59 = vector.shape_cast %9 : vector<8x1xf32> to vector<1x8x1xf32>
    %60 = vector.broadcast %58 : vector<8x1x1xf32> to vector<8x8x1xf32>
    %61 = vector.broadcast %59 : vector<1x8x1xf32> to vector<8x8x1xf32>
    %62 = arith.mulf %60, %61 : vector<8x8x1xf32>
    %63 = vector.shape_cast %62 : vector<8x8x1xf32> to vector<64x1xf32>
    %64 = vector.broadcast %63 : vector<64x1xf32> to vector<64x16xf32>
    %65 = arith.mulf %57, %64 : vector<64x16xf32>
    %c0_40 = arith.constant 0 : index
    %c0_41 = arith.constant 0 : index
    %c0_42 = arith.constant 0 : index
    %66 = vector.load %arg18[%c0_40, %c0_41, %c0_42] : memref<1x64x16xf32, #tpu.memory_space<vmem>>, vector<1x64x16xf32>
    %67 = vector.shape_cast %66 : vector<1x64x16xf32> to vector<64x16xf32>
    %68 = vector.shape_cast %65 : vector<64x16xf32> to vector<1x64x16xf32>
    tpu.vector_store %arg18[%c0_40, %c0_41, %c0_42], %68 {strides = array<i32>} : memref<1x64x16xf32, #tpu.memory_space<vmem>>, vector<1x64x16xf32>,
    %69 = vector.shape_cast %9 : vector<8x1xf32> to vector<1x8x1xf32>
    %cst_43 = arith.constant 0.000000e+00 : f32
    %70 = vector.broadcast %cst_43 : f32 to vector<1x8x1xf32>
    %71 = arith.cmpf ogt, %69, %70 : vector<1x8x1xf32>
    %cst_44 = arith.constant -1.000000e+30 : f32
    %72 = vector.shape_cast %71 : vector<1x8x1xi1> to vector<1x8x1xi1>
    %73 = vector.broadcast %72 : vector<1x8x1xi1> to vector<8x8x32xi1>
    %74 = vector.broadcast %cst_44 : f32 to vector<8x8x32xf32>
    %75 = arith.select %73, %48, %74 : vector<8x8x32xi1>, vector<8x8x32xf32>
    %cst_45 = arith.constant dense<0xFF800000> : vector<8x32xf32>
    %76 = vector.multi_reduction <maximumf>, %75, %cst_45 [1] : vector<8x8x32xf32> to vector<8x32xf32>
    %77 = vector.shape_cast %76 : vector<8x32xf32> to vector<8x1x32xf32>
    %78 = vector.broadcast %77 : vector<8x1x32xf32> to vector<8x8x32xf32>
    %79 = arith.subf %75, %78 : vector<8x8x32xf32>
    %80 = math.exp %79 : vector<8x8x32xf32>
    %cst_46 = arith.constant dense<0.000000e+00> : vector<8x32xf32>
    %81 = vector.multi_reduction <add>, %80, %cst_46 [1] : vector<8x8x32xf32> to vector<8x32xf32>
    %82 = vector.shape_cast %29 : vector<8x32xf32> to vector<1x8x32xf32>
    %83 = vector.broadcast %82 : vector<1x8x32xf32> to vector<8x8x32xf32>
    %84 = arith.mulf %80, %83 : vector<8x8x32xf32>
    %cst_47 = arith.constant dense<0.000000e+00> : vector<8x32xf32>
    %85 = vector.multi_reduction <add>, %84, %cst_47 [1] : vector<8x8x32xf32> to vector<8x32xf32>
    %86 = tpu.reciprocal %81 {approx = true} : vector<8x32xf32> -> vector<8x32xf32>
    %87 = arith.mulf %85, %86 : vector<8x32xf32>
    %cst_48 = arith.constant 1.000000e+00 : f32
    %88 = vector.broadcast %cst_48 : f32 to vector<1x32xf32>
    %89 = arith.addf %13, %88 : vector<1x32xf32>
    %90 = vector.broadcast %89 : vector<1x32xf32> to vector<8x32xf32>
    %91 = arith.mulf %90, %87 : vector<8x32xf32>
    %92 = vector.broadcast %12 : vector<1x32xf32> to vector<8x32xf32>
    %93 = arith.addf %92, %91 : vector<8x32xf32>
    %94 = arith.truncf %93 : vector<8x32xf32> to vector<8x32xbf16>
    %c0_49 = arith.constant 0 : index
    %c0_50 = arith.constant 0 : index
    %95 = vector.load %arg16[%c0_49, %c0_50] : memref<32x32xbf16, #tpu.memory_space<vmem>>, vector<32x32xbf16>
    %cst_51 = arith.constant dense<0.000000e+00> : vector<8x32xf32>
    %96 = tpu.matmul %94, %95, %cst_51 {dimension_numbers = #tpu.dot_dimension_numbers<[1], [0], [0], [1], [0, 0, 1, 1], [], []>} : vector<8x32xbf16>, vector<32x32xbf16>, vector<8x32xf32> -> vector<8x32xf32>
    %c0_52 = arith.constant 0 : index
    %c0_53 = arith.constant 0 : index
    %97 = vector.load %arg17[%c0_52, %c0_53] : memref<1x32xf32, #tpu.memory_space<vmem>>, vector<1x32xf32>
    %98 = vector.broadcast %97 : vector<1x32xf32> to vector<8x32xf32>
    %99 = arith.addf %96, %98 : vector<8x32xf32>
    %100 = vector.broadcast %7 : vector<8x1xf32> to vector<8x32xf32>
    %101 = arith.mulf %99, %100 : vector<8x32xf32>
    %c0_54 = arith.constant 0 : index
    %c0_55 = arith.constant 0 : index
    %c0_56 = arith.constant 0 : index
    %102 = vector.load %arg19[%c0_54, %c0_55, %c0_56] : memref<1x8x32xf32, #tpu.memory_space<vmem>>, vector<1x8x32xf32>
    %103 = vector.shape_cast %102 : vector<1x8x32xf32> to vector<8x32xf32>
    %104 = vector.shape_cast %101 : vector<8x32xf32> to vector<1x8x32xf32>
    tpu.vector_store %arg19[%c0_54, %c0_55, %c0_56], %104 {strides = array<i32>} : memref<1x8x32xf32, #tpu.memory_space<vmem>>, vector<1x8x32xf32>,
    %cst_57 = arith.constant dense<0.000000e+00> : vector<32xf32>
    %105 = vector.multi_reduction <add>, %1, %cst_57 [0] : vector<8x32xf32> to vector<32xf32>
    %106 = vector.shape_cast %105 : vector<32xf32> to vector<1x32xf32>
    %cst_58 = arith.constant dense<0x7F800000> : vector<32xf32>
    %107 = vector.multi_reduction <minimumf>, %1, %cst_58 [0] : vector<8x32xf32> to vector<32xf32>
    %108 = vector.shape_cast %107 : vector<32xf32> to vector<1x32xf32>
    %cst_59 = arith.constant dense<0xFF800000> : vector<32xf32>
    %109 = vector.multi_reduction <maximumf>, %1, %cst_59 [0] : vector<8x32xf32> to vector<32xf32>
    %110 = vector.shape_cast %109 : vector<32xf32> to vector<1x32xf32>
    %111 = arith.mulf %1, %1 : vector<8x32xf32>
    %cst_60 = arith.constant dense<0.000000e+00> : vector<32xf32>
    %112 = vector.multi_reduction <add>, %111, %cst_60 [0] : vector<8x32xf32> to vector<32xf32>
    %113 = vector.shape_cast %112 : vector<32xf32> to vector<1x32xf32>
    %114 = tpu.concatenate %106, %108, %110, %113 in 0 : vector<1x32xf32>, vector<1x32xf32>, vector<1x32xf32>, vector<1x32xf32> -> vector<4x32xf32>
    %c0_61 = arith.constant 0 : index
    %c0_62 = arith.constant 0 : index
    %c0_63 = arith.constant 0 : index
    %c0_64 = arith.constant 0 : index
    %115 = vector.load %arg20[%c0_61, %c0_62, %c0_63, %c0_64] : memref<1x1x4x32xf32, #tpu.memory_space<vmem>>, vector<1x1x4x32xf32>
    %116 = vector.shape_cast %115 : vector<1x1x4x32xf32> to vector<4x32xf32>
    %117 = vector.shape_cast %114 : vector<4x32xf32> to vector<1x1x4x32xf32>
    tpu.vector_store %arg20[%c0_61, %c0_62, %c0_63, %c0_64], %117 {strides = array<i32>} : memref<1x1x4x32xf32, #tpu.memory_space<vmem>>, vector<1x1x4x32xf32>,
    %cst_65 = arith.constant dense<0.000000e+00> : vector<16xf32>
    %118 = vector.multi_reduction <add>, %5, %cst_65 [0] : vector<64x16xf32> to vector<16xf32>
    %119 = vector.shape_cast %118 : vector<16xf32> to vector<1x16xf32>
    %cst_66 = arith.constant dense<0x7F800000> : vector<16xf32>
    %120 = vector.multi_reduction <minimumf>, %5, %cst_66 [0] : vector<64x16xf32> to vector<16xf32>
    %121 = vector.shape_cast %120 : vector<16xf32> to vector<1x16xf32>
    %cst_67 = arith.constant dense<0xFF800000> : vector<16xf32>
    %122 = vector.multi_reduction <maximumf>, %5, %cst_67 [0] : vector<64x16xf32> to vector<16xf32>
    %123 = vector.shape_cast %122 : vector<16xf32> to vector<1x16xf32>
    %124 = arith.mulf %5, %5 : vector<64x16xf32>
    %cst_68 = arith.constant dense<0.000000e+00> : vector<16xf32>
    %125 = vector.multi_reduction <add>, %124, %cst_68 [0] : vector<64x16xf32> to vector<16xf32>
    %126 = vector.shape_cast %125 : vector<16xf32> to vector<1x16xf32>
    %127 = tpu.concatenate %119, %121, %123, %126 in 0 : vector<1x16xf32>, vector<1x16xf32>, vector<1x16xf32>, vector<1x16xf32> -> vector<4x16xf32>
    %c0_69 = arith.constant 0 : index
    %c0_70 = arith.constant 0 : index
    %c0_71 = arith.constant 0 : index
    %c0_72 = arith.constant 0 : index
    %128 = vector.load %arg21[%c0_69, %c0_70, %c0_71, %c0_72] : memref<1x1x4x16xf32, #tpu.memory_space<vmem>>, vector<1x1x4x16xf32>
    %129 = vector.shape_cast %128 : vector<1x1x4x16xf32> to vector<4x16xf32>
    %130 = vector.shape_cast %127 : vector<4x16xf32> to vector<1x1x4x16xf32>
    tpu.vector_store %arg21[%c0_69, %c0_70, %c0_71, %c0_72], %130 {strides = array<i32>} : memref<1x1x4x16xf32, #tpu.memory_space<vmem>>, vector<1x1x4x16xf32>,
    return
  }
  func.func @transform_0(%arg0: i32, %arg1: i32) -> (i32, i32, i32) {
    %c0_i32 = arith.constant 0 : i32
    %c0_i32_0 = arith.constant 0 : i32
    return %arg0, %arg1, %c0_i32 : i32, i32, i32
  }
  func.func @transform_1(%arg0: i32, %arg1: i32) -> (i32, i32, i32) {
    %c0_i32 = arith.constant 0 : i32
    %c0_i32_0 = arith.constant 0 : i32
    %c0_i32_1 = arith.constant 0 : i32
    return %arg0, %c0_i32, %c0_i32_0 : i32, i32, i32
  }
  func.func @transform_2(%arg0: i32, %arg1: i32) -> (i32, i32, i32) {
    %c0_i32 = arith.constant 0 : i32
    %c0_i32_0 = arith.constant 0 : i32
    return %arg0, %arg1, %c0_i32 : i32, i32, i32
  }
  func.func @transform_3(%arg0: i32, %arg1: i32) -> (i32, i32, i32) {
    %c0_i32 = arith.constant 0 : i32
    %c0_i32_0 = arith.constant 0 : i32
    %c0_i32_1 = arith.constant 0 : i32
    return %arg0, %c0_i32, %c0_i32_0 : i32, i32, i32
  }
  func.func @transform_4(%arg0: i32, %arg1: i32) -> (i32, i32, i32) {
    %c0_i32 = arith.constant 0 : i32
    %c0_i32_0 = arith.constant 0 : i32
    return %arg0, %arg1, %c0_i32 : i32, i32, i32
  }
  func.func @transform_5(%arg0: i32, %arg1: i32) -> (i32, i32, i32) {
    %c0_i32 = arith.constant 0 : i32
    %c0_i32_0 = arith.constant 0 : i32
    %c0_i32_1 = arith.constant 0 : i32
    return %arg0, %c0_i32, %c0_i32_0 : i32, i32, i32
  }
  func.func @transform_6(%arg0: i32, %arg1: i32) -> (i32, i32, i32) {
    %c0_i32 = arith.constant 0 : i32
    %c0_i32_0 = arith.constant 0 : i32
    %c0_i32_1 = arith.constant 0 : i32
    return %arg0, %c0_i32, %c0_i32_0 : i32, i32, i32
  }
  func.func @transform_7(%arg0: i32, %arg1: i32) -> (i32, i32, i32) {
    %c0_i32 = arith.constant 0 : i32
    %c0_i32_0 = arith.constant 0 : i32
    %c0_i32_1 = arith.constant 0 : i32
    return %arg0, %c0_i32, %c0_i32_0 : i32, i32, i32
  }
  func.func @transform_8(%arg0: i32, %arg1: i32) -> (i32, i32) {
    %c0_i32 = arith.constant 0 : i32
    %c0_i32_0 = arith.constant 0 : i32
    %c0_i32_1 = arith.constant 0 : i32
    return %c0_i32, %c0_i32_0 : i32, i32
  }
  func.func @transform_9(%arg0: i32, %arg1: i32) -> (i32, i32) {
    %c0_i32 = arith.constant 0 : i32
    %c0_i32_0 = arith.constant 0 : i32
    %c0_i32_1 = arith.constant 0 : i32
    return %c0_i32, %c0_i32_0 : i32, i32
  }
  func.func @transform_10(%arg0: i32, %arg1: i32) -> (i32, i32) {
    %c0_i32 = arith.constant 0 : i32
    %c0_i32_0 = arith.constant 0 : i32
    %c0_i32_1 = arith.constant 0 : i32
    return %c0_i32, %c0_i32_0 : i32, i32
  }
  func.func @transform_11(%arg0: i32, %arg1: i32) -> (i32, i32) {
    %c0_i32 = arith.constant 0 : i32
    %c0_i32_0 = arith.constant 0 : i32
    %c0_i32_1 = arith.constant 0 : i32
    return %c0_i32, %c0_i32_0 : i32, i32
  }
  func.func @transform_12(%arg0: i32, %arg1: i32) -> (i32, i32) {
    %c0_i32 = arith.constant 0 : i32
    %c0_i32_0 = arith.constant 0 : i32
    %c0_i32_1 = arith.constant 0 : i32
    return %c0_i32, %c0_i32_0 : i32, i32
  }
  func.func @transform_13(%arg0: i32, %arg1: i32) -> (i32, i32) {
    %c0_i32 = arith.constant 0 : i32
    %c0_i32_0 = arith.constant 0 : i32
    %c0_i32_1 = arith.constant 0 : i32
    return %c0_i32, %c0_i32_0 : i32, i32
  }
  func.func @transform_14(%arg0: i32, %arg1: i32) -> (i32, i32) {
    %c0_i32 = arith.constant 0 : i32
    %c0_i32_0 = arith.constant 0 : i32
    %c0_i32_1 = arith.constant 0 : i32
    return %c0_i32, %c0_i32_0 : i32, i32
  }
  func.func @transform_15(%arg0: i32, %arg1: i32) -> (i32, i32) {
    %c0_i32 = arith.constant 0 : i32
    %c0_i32_0 = arith.constant 0 : i32
    %c0_i32_1 = arith.constant 0 : i32
    return %c0_i32, %c0_i32_0 : i32, i32
  }
  func.func @transform_16(%arg0: i32, %arg1: i32) -> (i32, i32, i32) {
    %c0_i32 = arith.constant 0 : i32
    %c0_i32_0 = arith.constant 0 : i32
    return %arg0, %arg1, %c0_i32 : i32, i32, i32
  }
  func.func @transform_17(%arg0: i32, %arg1: i32) -> (i32, i32, i32) {
    %c0_i32 = arith.constant 0 : i32
    %c0_i32_0 = arith.constant 0 : i32
    return %arg0, %arg1, %c0_i32 : i32, i32, i32
  }
  func.func @transform_18(%arg0: i32, %arg1: i32) -> (i32, i32, i32, i32) {
    %c0_i32 = arith.constant 0 : i32
    %c0_i32_0 = arith.constant 0 : i32
    %c0_i32_1 = arith.constant 0 : i32
    return %arg0, %arg1, %c0_i32, %c0_i32_0 : i32, i32, i32, i32
  }
  func.func @transform_19(%arg0: i32, %arg1: i32) -> (i32, i32, i32, i32) {
    %c0_i32 = arith.constant 0 : i32
    %c0_i32_0 = arith.constant 0 : i32
    %c0_i32_1 = arith.constant 0 : i32
    return %arg0, %arg1, %c0_i32, %c0_i32_0 : i32, i32, i32, i32
  }
}

</mosaic_0001>

<llo_original>
// kernel: tpu_custom_call.1
$region0: #{tpu_custom_call.1}
  #allocation0 [shape = 'u32[]', space=smem, size = 0x4, offset = 0x4, fixed_abs, tag = 'smem constant byte address 0x4 - core index']
  #allocation1 [shape = 'u32[144,128]{1,0:T(1,128)}', space=vmem, size = 0x12000, scoped, tag = 'internal scratch']
  %s0 = inlined_call_operand.vmem [shape: f32[2,8,32], index: 0, kind: input, shape index: {}]
  %s1 = inlined_call_operand.vmem [shape: f32[2,8,32], index: 1, kind: input, shape index: {}]
  %s2 = inlined_call_operand.vmem [shape: f32[2,64,16], index: 2, kind: input, shape index: {}]
  %s3 = inlined_call_operand.vmem [shape: f32[2,1,64], index: 3, kind: input, shape index: {}]
  %s4 = inlined_call_operand.vmem [shape: f32[2,8,1], index: 4, kind: input, shape index: {}]
  %s5 = inlined_call_operand.vmem [shape: f32[2,8,1], index: 5, kind: input, shape index: {}]
  %s6 = inlined_call_operand.vmem [shape: bf16[2,32,16], index: 6, kind: input, shape index: {}]
  %s7 = inlined_call_operand.vmem [shape: f32[2,1,16], index: 7, kind: input, shape index: {}]
  %s8 = inlined_call_operand.vmem [shape: bf16[32,32], index: 8, kind: input, shape index: {}]
  %s9 = inlined_call_operand.vmem [shape: f32[1,32], index: 9, kind: input, shape index: {}]
  %s10 = inlined_call_operand.vmem [shape: bf16[32,64], index: 10, kind: input, shape index: {}]
  %s11 = inlined_call_operand.vmem [shape: f32[1,64], index: 11, kind: input, shape index: {}]
  %s12 = inlined_call_operand.vmem [shape: bf16[16,64], index: 12, kind: input, shape index: {}]
  %s13 = inlined_call_operand.vmem [shape: f32[1,64], index: 13, kind: input, shape index: {}]
  %s14 = inlined_call_operand.vmem [shape: bf16[32,32], index: 14, kind: input, shape index: {}]
  %s15 = inlined_call_operand.vmem [shape: f32[1,32], index: 15, kind: input, shape index: {}]
  %s16 = inlined_call_operand.vmem [shape: f32[2,64,16], index: 16, kind: output, shape index: {0}]
  %s17 = inlined_call_operand.hbm [shape: f32[2,8,32], index: 17, kind: output, shape index: {1}]
  %s18 = inlined_call_operand.hbm [shape: f32[2,1,4,32], index: 18, kind: output, shape index: {2}]
  %s19 = inlined_call_operand.hbm [shape: f32[2,1,4,16], index: 19, kind: output, shape index: {3}]
  %20 = xla_tuple %s16, %s17, %s18, %s19
  %s21 = sld [smem:[#allocation0]]
  $region121: #{tpu_custom_call.1} parent=0
    _
  %s23 = ssub.s32 1, %s21
  %s24 = scalar_select 0, %s23, %s21
  $region1: #{tpu_custom_call.1} parent=0
    #allocation2 [shape = 'u8[8192]{0}', space=vmem, size = 0x2000, scoped, tag = 'output window, operand 1']
    #allocation3 [shape = 's32[2]{0}', space=sflag, size = 0x8, scoped, tag = 'scoped memory for tpu_custom_call.1']
    #allocation4 [shape = 'u8[4096]{0}', space=vmem, size = 0x1000, scoped, tag = 'output window, operand 2']
    #allocation5 [shape = 's32[2]{0}', space=sflag, size = 0x8, scoped, tag = 'scoped memory for tpu_custom_call.1']
    #allocation6 [shape = 'u8[4096]{0}', space=vmem, size = 0x1000, scoped, tag = 'output window, operand 3']
    %25 = vsyncpa [#allocation3], 0
    %s26 = scalar_lea.sflag [#allocation3], 1
    %27 = vsyncpa %s26, 0
    %28 = vsyncpa [#allocation5], 0
    %s29 = scalar_lea.sflag [#allocation5], 1
    %30 = vsyncpa %s29, 0
    loop: start=0, step=1, limit=4
    $region2: #{tpu_custom_call.1} parent=1 // loop_pre_header
      _
    $region3: #{tpu_custom_call.1} parent=1 // loop_header
      %s32 = sphi 0, %s36
      %p33 = scmp.ge.s32.totalorder %s32, 4
      %s39 = sphi 0, %s51
      %s40 = sphi 0, %s47
      %s41 = sphi 0, %s39
      %s42 = sphi 0, %s40
      %s43 = sphi 0, %s41
      %s44 = sphi 0, %s42
      %s56 = sphi 0, %s58
      %s59 = sphi 0, %s56
      %s60 = sphi 0, %s59
      %s76 = sphi 0, %s60
      %s82 = sphi 0, %s84
      %s85 = sphi 0, %s82
      %s86 = sphi 0, %s85
      %s102 = sphi 0, %s86
      %s110 = sphi 0, %s112
      %s113 = sphi 0, %s110
      %s114 = sphi 0, %s113
      %s130 = sphi 0, %s114
      %s136 = sphi 0, %s138
      %s139 = sphi 0, %s136
      %s140 = sphi 0, %s139
      %s156 = sphi 0, %s140
      %s164 = sphi 0, %s166
      %s167 = sphi 0, %s164
      %s168 = sphi 0, %s167
      %s184 = sphi 0, %s168
      %s190 = sphi 0, %s192
      %s193 = sphi 0, %s190
      %s194 = sphi 0, %s193
      %s210 = sphi 0, %s194
      %s216 = sphi 0, %s218
      %s219 = sphi 0, %s216
      %s220 = sphi 0, %s219
      %s236 = sphi 0, %s220
      %s242 = sphi 0, %s244
      %s245 = sphi 0, %s242
      %s246 = sphi 0, %s245
      %s262 = sphi 0, %s246
      %s266 = sphi 0, %s266
      %s268 = sphi 0, %s266
      %s269 = sphi 0, %s268
      %s283 = sphi 0, %s269
      %s287 = sphi 0, %s287
      %s289 = sphi 0, %s287
      %s290 = sphi 0, %s289
      %s304 = sphi 0, %s290
      %s308 = sphi 0, %s308
      %s310 = sphi 0, %s308
      %s311 = sphi 0, %s310
      %s325 = sphi 0, %s311
      %s329 = sphi 0, %s329
      %s331 = sphi 0, %s329
      %s332 = sphi 0, %s331
      %s346 = sphi 0, %s332
      %s350 = sphi 0, %s350
      %s352 = sphi 0, %s350
      %s353 = sphi 0, %s352
      %s367 = sphi 0, %s353
      %s371 = sphi 0, %s371
      %s373 = sphi 0, %s371
      %s374 = sphi 0, %s373
      %s388 = sphi 0, %s374
      %s392 = sphi 0, %s392
      %s394 = sphi 0, %s392
      %s395 = sphi 0, %s394
      %s409 = sphi 0, %s395
      %s413 = sphi 0, %s413
      %s415 = sphi 0, %s413
      %s416 = sphi 0, %s415
      %s430 = sphi 0, %s416
      %s438 = sphi 0, %s440
      %s441 = sphi 0, %s438
      %s442 = sphi 0, %s441
      %s458 = sphi 0, %s442
      %s466 = sphi 0, %s468
      %s469 = sphi 0, %s466
      %s470 = sphi 0, %s469
      %s486 = sphi 0, %s470
      %s494 = sphi 0, %s496
      %s497 = sphi 0, %s494
      %s498 = sphi 0, %s497
      %s514 = sphi 0, %s498
      %s522 = sphi 0, %s524
      %s525 = sphi 0, %s522
      %s526 = sphi 0, %s525
      %s542 = sphi 0, %s526
    $region4: #{tpu_custom_call.1} parent=1 // loop_header_branch
      %35 = sbr.rel (%p33) target = $region8
    $region5: #{tpu_custom_call.1} parent=1 // loop_body
      %s37 = ssub.s32 %s32, 1
      %s38 = ssub.s32 %s32, 2
      %s45 = sadd.s32 1, %s40
      %p46 = scmp.ge.s32.totalorder %s45, 1
      %s47 = scalar_select %p46, 0, %s45
      %s48 = sadd.s32 1, %s39
      %s49 = scalar_select %p46, %s48, %s39
      %p50 = scmp.ge.s32.totalorder %s49, 2
      %s51 = scalar_select %p50, 0, %s49
      %s52 = ssub.s32 %s39, %s51
      %s53 = ssub.s32 %s40, %s47
      %s54 = sor.u32 %s52, %s53
      %p55 = scmp.eq.s32.totalorder %s54, 0
      %s57 = sadd.s32 %s56, 1
      %s58 = scalar_select %p55, %s56, %s57
      %p61 = pneg %p55
      %p62 = scmp.eq.s32.totalorder %s32, 1
      %p63 = por %p61, %p62
      %p64 = scmp.ne.s32.totalorder %s56, %s59
      %p65 = scmp.eq.s32.totalorder %s32, 0
      %p66 = por %p64, %p65
      %p67 = scmp.ne.s32.totalorder %s56, %s59
      %p68 = scmp.eq.s32.totalorder %s37, 1
      %p69 = por %p67, %p68
      %p70 = scmp.ne.s32.totalorder %s59, %s60
      %p71 = scmp.eq.s32.totalorder %s37, 0
      %p72 = por %p70, %p71
      %p73 = scmp.ne.s32.totalorder %s59, %s60
      %p74 = scmp.eq.s32.totalorder %s38, 1
      %p75 = por %p73, %p74
      %p77 = scmp.ne.s32.totalorder %s60, %s76
      %p78 = scmp.eq.s32.totalorder %s38, 0
      %p79 = por %p77, %p78
      %s80 = ssub.s32 %s39, %s51
      %p81 = scmp.eq.s32.totalorder %s80, 0
      %s83 = sadd.s32 %s82, 1
      %s84 = scalar_select %p81, %s82, %s83
      %p87 = pneg %p81
      %p88 = scmp.eq.s32.totalorder %s32, 1
      %p89 = por %p87, %p88
      %p90 = scmp.ne.s32.totalorder %s82, %s85
      %p91 = scmp.eq.s32.totalorder %s32, 0
      %p92 = por %p90, %p91
      %p93 = scmp.ne.s32.totalorder %s82, %s85
      %p94 = scmp.eq.s32.totalorder %s37, 1
      %p95 = por %p93, %p94
      %p96 = scmp.ne.s32.totalorder %s85, %s86
      %p97 = scmp.eq.s32.totalorder %s37, 0
      %p98 = por %p96, %p97
      %p99 = scmp.ne.s32.totalorder %s85, %s86
      %p100 = scmp.eq.s32.totalorder %s38, 1
      %p101 = por %p99, %p100
      %p103 = scmp.ne.s32.totalorder %s86, %s102
      %p104 = scmp.eq.s32.totalorder %s38, 0
      %p105 = por %p103, %p104
      %s106 = ssub.s32 %s39, %s51
      %s107 = ssub.s32 %s40, %s47
      %s108 = sor.u32 %s106, %s107
      %p109 = scmp.eq.s32.totalorder %s108, 0
      %s111 = sadd.s32 %s110, 1
      %s112 = scalar_select %p109, %s110, %s111
      %p115 = pneg %p109
      %p116 = scmp.eq.s32.totalorder %s32, 1
      %p117 = por %p115, %p116
      %p118 = scmp.ne.s32.totalorder %s110, %s113
      %p119 = scmp.eq.s32.totalorder %s32, 0
      %p120 = por %p118, %p119
      %p121 = scmp.ne.s32.totalorder %s110, %s113
      %p122 = scmp.eq.s32.totalorder %s37, 1
      %p123 = por %p121, %p122
      %p124 = scmp.ne.s32.totalorder %s113, %s114
      %p125 = scmp.eq.s32.totalorder %s37, 0
      %p126 = por %p124, %p125
      %p127 = scmp.ne.s32.totalorder %s113, %s114
      %p128 = scmp.eq.s32.totalorder %s38, 1
      %p129 = por %p127, %p128
      %p131 = scmp.ne.s32.totalorder %s114, %s130
      %p132 = scmp.eq.s32.totalorder %s38, 0
      %p133 = por %p131, %p132
      %s134 = ssub.s32 %s39, %s51
      %p135 = scmp.eq.s32.totalorder %s134, 0
      %s137 = sadd.s32 %s136, 1
      %s138 = scalar_select %p135, %s136, %s137
      %p141 = pneg %p135
      %p142 = scmp.eq.s32.totalorder %s32, 1
      %p143 = por %p141, %p142
      %p144 = scmp.ne.s32.totalorder %s136, %s139
      %p145 = scmp.eq.s32.totalorder %s32, 0
      %p146 = por %p144, %p145
      %p147 = scmp.ne.s32.totalorder %s136, %s139
      %p148 = scmp.eq.s32.totalorder %s37, 1
      %p149 = por %p147, %p148
      %p150 = scmp.ne.s32.totalorder %s139, %s140
      %p151 = scmp.eq.s32.totalorder %s37, 0
      %p152 = por %p150, %p151
      %p153 = scmp.ne.s32.totalorder %s139, %s140
      %p154 = scmp.eq.s32.totalorder %s38, 1
      %p155 = por %p153, %p154
      %p157 = scmp.ne.s32.totalorder %s140, %s156
      %p158 = scmp.eq.s32.totalorder %s38, 0
      %p159 = por %p157, %p158
      %s160 = ssub.s32 %s39, %s51
      %s161 = ssub.s32 %s40, %s47
      %s162 = sor.u32 %s160, %s161
      %p163 = scmp.eq.s32.totalorder %s162, 0
      %s165 = sadd.s32 %s164, 1
      %s166 = scalar_select %p163, %s164, %s165
      %p169 = pneg %p163
      %p170 = scmp.eq.s32.totalorder %s32, 1
      %p171 = por %p169, %p170
      %p172 = scmp.ne.s32.totalorder %s164, %s167
      %p173 = scmp.eq.s32.totalorder %s32, 0
      %p174 = por %p172, %p173
      %p175 = scmp.ne.s32.totalorder %s164, %s167
      %p176 = scmp.eq.s32.totalorder %s37, 1
      %p177 = por %p175, %p176
      %p178 = scmp.ne.s32.totalorder %s167, %s168
      %p179 = scmp.eq.s32.totalorder %s37, 0
      %p180 = por %p178, %p179
      %p181 = scmp.ne.s32.totalorder %s167, %s168
      %p182 = scmp.eq.s32.totalorder %s38, 1
      %p183 = por %p181, %p182
      %p185 = scmp.ne.s32.totalorder %s168, %s184
      %p186 = scmp.eq.s32.totalorder %s38, 0
      %p187 = por %p185, %p186
      %s188 = ssub.s32 %s39, %s51
      %p189 = scmp.eq.s32.totalorder %s188, 0
      %s191 = sadd.s32 %s190, 1
      %s192 = scalar_select %p189, %s190, %s191
      %p195 = pneg %p189
      %p196 = scmp.eq.s32.totalorder %s32, 1
      %p197 = por %p195, %p196
      %p198 = scmp.ne.s32.totalorder %s190, %s193
      %p199 = scmp.eq.s32.totalorder %s32, 0
      %p200 = por %p198, %p199
      %p201 = scmp.ne.s32.totalorder %s190, %s193
      %p202 = scmp.eq.s32.totalorder %s37, 1
      %p203 = por %p201, %p202
      %p204 = scmp.ne.s32.totalorder %s193, %s194
      %p205 = scmp.eq.s32.totalorder %s37, 0
      %p206 = por %p204, %p205
      %p207 = scmp.ne.s32.totalorder %s193, %s194
      %p208 = scmp.eq.s32.totalorder %s38, 1
      %p209 = por %p207, %p208
      %p211 = scmp.ne.s32.totalorder %s194, %s210
      %p212 = scmp.eq.s32.totalorder %s38, 0
      %p213 = por %p211, %p212
      %s214 = ssub.s32 %s39, %s51
      %p215 = scmp.eq.s32.totalorder %s214, 0
      %s217 = sadd.s32 %s216, 1
      %s218 = scalar_select %p215, %s216, %s217
      %p221 = pneg %p215
      %p222 = scmp.eq.s32.totalorder %s32, 1
      %p223 = por %p221, %p222
      %p224 = scmp.ne.s32.totalorder %s216, %s219
      %p225 = scmp.eq.s32.totalorder %s32, 0
      %p226 = por %p224, %p225
      %p227 = scmp.ne.s32.totalorder %s216, %s219
      %p228 = scmp.eq.s32.totalorder %s37, 1
      %p229 = por %p227, %p228
      %p230 = scmp.ne.s32.totalorder %s219, %s220
      %p231 = scmp.eq.s32.totalorder %s37, 0
      %p232 = por %p230, %p231
      %p233 = scmp.ne.s32.totalorder %s219, %s220
      %p234 = scmp.eq.s32.totalorder %s38, 1
      %p235 = por %p233, %p234
      %p237 = scmp.ne.s32.totalorder %s220, %s236
      %p238 = scmp.eq.s32.totalorder %s38, 0
      %p239 = por %p237, %p238
      %s240 = ssub.s32 %s39, %s51
      %p241 = scmp.eq.s32.totalorder %s240, 0
      %s243 = sadd.s32 %s242, 1
      %s244 = scalar_select %p241, %s242, %s243
      %p247 = pneg %p241
      %p248 = scmp.eq.s32.totalorder %s32, 1
      %p249 = por %p247, %p248
      %p250 = scmp.ne.s32.totalorder %s242, %s245
      %p251 = scmp.eq.s32.totalorder %s32, 0
      %p252 = por %p250, %p251
      %p253 = scmp.ne.s32.totalorder %s242, %s245
      %p254 = scmp.eq.s32.totalorder %s37, 1
      %p255 = por %p253, %p254
      %p256 = scmp.ne.s32.totalorder %s245, %s246
      %p257 = scmp.eq.s32.totalorder %s37, 0
      %p258 = por %p256, %p257
      %p259 = scmp.ne.s32.totalorder %s245, %s246
      %p260 = scmp.eq.s32.totalorder %s38, 1
      %p261 = por %p259, %p260
      %p263 = scmp.ne.s32.totalorder %s246, %s262
      %p264 = scmp.eq.s32.totalorder %s38, 0
      %p265 = por %p263, %p264
      %s267 = sadd.s32 %s266, 1
      %p270 = scmp.eq.s32.totalorder %s32, 1
      %p271 = scmp.ne.s32.totalorder %s266, %s268
      %p272 = scmp.eq.s32.totalorder %s32, 0
      %p273 = por %p271, %p272
      %p274 = scmp.ne.s32.totalorder %s266, %s268
      %p275 = scmp.eq.s32.totalorder %s37, 1
      %p276 = por %p274, %p275
      %p277 = scmp.ne.s32.totalorder %s268, %s269
      %p278 = scmp.eq.s32.totalorder %s37, 0
      %p279 = por %p277, %p278
      %p280 = scmp.ne.s32.totalorder %s268, %s269
      %p281 = scmp.eq.s32.totalorder %s38, 1
      %p282 = por %p280, %p281
      %p284 = scmp.ne.s32.totalorder %s269, %s283
      %p285 = scmp.eq.s32.totalorder %s38, 0
      %p286 = por %p284, %p285
      %s288 = sadd.s32 %s287, 1
      %p291 = scmp.eq.s32.totalorder %s32, 1
      %p292 = scmp.ne.s32.totalorder %s287, %s289
      %p293 = scmp.eq.s32.totalorder %s32, 0
      %p294 = por %p292, %p293
      %p295 = scmp.ne.s32.totalorder %s287, %s289
      %p296 = scmp.eq.s32.totalorder %s37, 1
      %p297 = por %p295, %p296
      %p298 = scmp.ne.s32.totalorder %s289, %s290
      %p299 = scmp.eq.s32.totalorder %s37, 0
      %p300 = por %p298, %p299
      %p301 = scmp.ne.s32.totalorder %s289, %s290
      %p302 = scmp.eq.s32.totalorder %s38, 1
      %p303 = por %p301, %p302
      %p305 = scmp.ne.s32.totalorder %s290, %s304
      %p306 = scmp.eq.s32.totalorder %s38, 0
      %p307 = por %p305, %p306
      %s309 = sadd.s32 %s308, 1
      %p312 = scmp.eq.s32.totalorder %s32, 1
      %p313 = scmp.ne.s32.totalorder %s308, %s310
      %p314 = scmp.eq.s32.totalorder %s32, 0
      %p315 = por %p313, %p314
      %p316 = scmp.ne.s32.totalorder %s308, %s310
      %p317 = scmp.eq.s32.totalorder %s37, 1
      %p318 = por %p316, %p317
      %p319 = scmp.ne.s32.totalorder %s310, %s311
      %p320 = scmp.eq.s32.totalorder %s37, 0
      %p321 = por %p319, %p320
      %p322 = scmp.ne.s32.totalorder %s310, %s311
      %p323 = scmp.eq.s32.totalorder %s38, 1
      %p324 = por %p322, %p323
      %p326 = scmp.ne.s32.totalorder %s311, %s325
      %p327 = scmp.eq.s32.totalorder %s38, 0
      %p328 = por %p326, %p327
      %s330 = sadd.s32 %s329, 1
      %p333 = scmp.eq.s32.totalorder %s32, 1
      %p334 = scmp.ne.s32.totalorder %s329, %s331
      %p335 = scmp.eq.s32.totalorder %s32, 0
      %p336 = por %p334, %p335
      %p337 = scmp.ne.s32.totalorder %s329, %s331
      %p338 = scmp.eq.s32.totalorder %s37, 1
      %p339 = por %p337, %p338
      %p340 = scmp.ne.s32.totalorder %s331, %s332
      %p341 = scmp.eq.s32.totalorder %s37, 0
      %p342 = por %p340, %p341
      %p343 = scmp.ne.s32.totalorder %s331, %s332
      %p344 = scmp.eq.s32.totalorder %s38, 1
      %p345 = por %p343, %p344
      %p347 = scmp.ne.s32.totalorder %s332, %s346
      %p348 = scmp.eq.s32.totalorder %s38, 0
      %p349 = por %p347, %p348
      %s351 = sadd.s32 %s350, 1
      %p354 = scmp.eq.s32.totalorder %s32, 1
      %p355 = scmp.ne.s32.totalorder %s350, %s352
      %p356 = scmp.eq.s32.totalorder %s32, 0
      %p357 = por %p355, %p356
      %p358 = scmp.ne.s32.totalorder %s350, %s352
      %p359 = scmp.eq.s32.totalorder %s37, 1
      %p360 = por %p358, %p359
      %p361 = scmp.ne.s32.totalorder %s352, %s353
      %p362 = scmp.eq.s32.totalorder %s37, 0
      %p363 = por %p361, %p362
      %p364 = scmp.ne.s32.totalorder %s352, %s353
      %p365 = scmp.eq.s32.totalorder %s38, 1
      %p366 = por %p364, %p365
      %p368 = scmp.ne.s32.totalorder %s353, %s367
      %p369 = scmp.eq.s32.totalorder %s38, 0
      %p370 = por %p368, %p369
      %s372 = sadd.s32 %s371, 1
      %p375 = scmp.eq.s32.totalorder %s32, 1
      %p376 = scmp.ne.s32.totalorder %s371, %s373
      %p377 = scmp.eq.s32.totalorder %s32, 0
      %p378 = por %p376, %p377
      %p379 = scmp.ne.s32.totalorder %s371, %s373
      %p380 = scmp.eq.s32.totalorder %s37, 1
      %p381 = por %p379, %p380
      %p382 = scmp.ne.s32.totalorder %s373, %s374
      %p383 = scmp.eq.s32.totalorder %s37, 0
      %p384 = por %p382, %p383
      %p385 = scmp.ne.s32.totalorder %s373, %s374
      %p386 = scmp.eq.s32.totalorder %s38, 1
      %p387 = por %p385, %p386
      %p389 = scmp.ne.s32.totalorder %s374, %s388
      %p390 = scmp.eq.s32.totalorder %s38, 0
      %p391 = por %p389, %p390
      %s393 = sadd.s32 %s392, 1
      %p396 = scmp.eq.s32.totalorder %s32, 1
      %p397 = scmp.ne.s32.totalorder %s392, %s394
      %p398 = scmp.eq.s32.totalorder %s32, 0
      %p399 = por %p397, %p398
      %p400 = scmp.ne.s32.totalorder %s392, %s394
      %p401 = scmp.eq.s32.totalorder %s37, 1
      %p402 = por %p400, %p401
      %p403 = scmp.ne.s32.totalorder %s394, %s395
      %p404 = scmp.eq.s32.totalorder %s37, 0
      %p405 = por %p403, %p404
      %p406 = scmp.ne.s32.totalorder %s394, %s395
      %p407 = scmp.eq.s32.totalorder %s38, 1
      %p408 = por %p406, %p407
      %p410 = scmp.ne.s32.totalorder %s395, %s409
      %p411 = scmp.eq.s32.totalorder %s38, 0
      %p412 = por %p410, %p411
      %s414 = sadd.s32 %s413, 1
      %p417 = scmp.eq.s32.totalorder %s32, 1
      %p418 = scmp.ne.s32.totalorder %s413, %s415
      %p419 = scmp.eq.s32.totalorder %s32, 0
      %p420 = por %p418, %p419
      %p421 = scmp.ne.s32.totalorder %s413, %s415
      %p422 = scmp.eq.s32.totalorder %s37, 1
      %p423 = por %p421, %p422
      %p424 = scmp.ne.s32.totalorder %s415, %s416
      %p425 = scmp.eq.s32.totalorder %s37, 0
      %p426 = por %p424, %p425
      %p427 = scmp.ne.s32.totalorder %s415, %s416
      %p428 = scmp.eq.s32.totalorder %s38, 1
      %p429 = por %p427, %p428
      %p431 = scmp.ne.s32.totalorder %s416, %s430
      %p432 = scmp.eq.s32.totalorder %s38, 0
      %p433 = por %p431, %p432
      %s434 = ssub.s32 %s39, %s51
      %s435 = ssub.s32 %s40, %s47
      %s436 = sor.u32 %s434, %s435
      %p437 = scmp.eq.s32.totalorder %s436, 0
      %s439 = sadd.s32 %s438, 1
      %s440 = scalar_select %p437, %s438, %s439
      %p443 = pneg %p437
      %p444 = scmp.eq.s32.totalorder %s32, 1
      %p445 = por %p443, %p444
      %p446 = scmp.ne.s32.totalorder %s438, %s441
      %p447 = scmp.eq.s32.totalorder %s32, 0
      %p448 = por %p446, %p447
      %p449 = scmp.ne.s32.totalorder %s438, %s441
      %p450 = scmp.eq.s32.totalorder %s37, 1
      %p451 = por %p449, %p450
      %p452 = scmp.ne.s32.totalorder %s441, %s442
      %p453 = scmp.eq.s32.totalorder %s37, 0
      %p454 = por %p452, %p453
      %p455 = scmp.ne.s32.totalorder %s441, %s442
      %p456 = scmp.eq.s32.totalorder %s38, 1
      %p457 = por %p455, %p456
      %p459 = scmp.ne.s32.totalorder %s442, %s458
      %p460 = scmp.eq.s32.totalorder %s38, 0
      %p461 = por %p459, %p460
      %s462 = ssub.s32 %s39, %s51
      %s463 = ssub.s32 %s40, %s47
      %s464 = sor.u32 %s462, %s463
      %p465 = scmp.eq.s32.totalorder %s464, 0
      %s467 = sadd.s32 %s466, 1
      %s468 = scalar_select %p465, %s466, %s467
      %p471 = pneg %p465
      %p472 = scmp.eq.s32.totalorder %s32, 1
      %p473 = por %p471, %p472
      %p474 = scmp.ne.s32.totalorder %s466, %s469
      %p475 = scmp.eq.s32.totalorder %s32, 0
      %p476 = por %p474, %p475
      %p477 = scmp.ne.s32.totalorder %s466, %s469
      %p478 = scmp.eq.s32.totalorder %s37, 1
      %p479 = por %p477, %p478
      %p480 = scmp.ne.s32.totalorder %s469, %s470
      %p481 = scmp.eq.s32.totalorder %s37, 0
      %p482 = por %p480, %p481
      %p483 = scmp.ne.s32.totalorder %s469, %s470
      %p484 = scmp.eq.s32.totalorder %s38, 1
      %p485 = por %p483, %p484
      %p487 = scmp.ne.s32.totalorder %s470, %s486
      %p488 = scmp.eq.s32.totalorder %s38, 0
      %p489 = por %p487, %p488
      %s490 = ssub.s32 %s39, %s51
      %s491 = ssub.s32 %s40, %s47
      %s492 = sor.u32 %s490, %s491
      %p493 = scmp.eq.s32.totalorder %s492, 0
      %s495 = sadd.s32 %s494, 1
      %s496 = scalar_select %p493, %s494, %s495
      %p499 = pneg %p493
      %p500 = scmp.eq.s32.totalorder %s32, 1
      %p501 = por %p499, %p500
      %p502 = scmp.ne.s32.totalorder %s494, %s497
      %p503 = scmp.eq.s32.totalorder %s32, 0
      %p504 = por %p502, %p503
      %p505 = scmp.ne.s32.totalorder %s494, %s497
      %p506 = scmp.eq.s32.totalorder %s37, 1
      %p507 = por %p505, %p506
      %p508 = scmp.ne.s32.totalorder %s497, %s498
      %p509 = scmp.eq.s32.totalorder %s37, 0
      %p510 = por %p508, %p509
      %p511 = scmp.ne.s32.totalorder %s497, %s498
      %p512 = scmp.eq.s32.totalorder %s38, 1
      %p513 = por %p511, %p512
      %p515 = scmp.ne.s32.totalorder %s498, %s514
      %p516 = scmp.eq.s32.totalorder %s38, 0
      %p517 = por %p515, %p516
      %s518 = ssub.s32 %s39, %s51
      %s519 = ssub.s32 %s40, %s47
      %s520 = sor.u32 %s518, %s519
      %p521 = scmp.eq.s32.totalorder %s520, 0
      %s523 = sadd.s32 %s522, 1
      %s524 = scalar_select %p521, %s522, %s523
      %p527 = pneg %p521
      %p528 = scmp.eq.s32.totalorder %s32, 1
      %p529 = por %p527, %p528
      %p530 = scmp.ne.s32.totalorder %s522, %s525
      %p531 = scmp.eq.s32.totalorder %s32, 0
      %p532 = por %p530, %p531
      %p533 = scmp.ne.s32.totalorder %s522, %s525
      %p534 = scmp.eq.s32.totalorder %s37, 1
      %p535 = por %p533, %p534
      %p536 = scmp.ne.s32.totalorder %s525, %s526
      %p537 = scmp.eq.s32.totalorder %s37, 0
      %p538 = por %p536, %p537
      %p539 = scmp.ne.s32.totalorder %s525, %s526
      %p540 = scmp.eq.s32.totalorder %s38, 1
      %p541 = por %p539, %p540
      %p543 = scmp.ne.s32.totalorder %s526, %s542
      %p544 = scmp.eq.s32.totalorder %s38, 0
      %p545 = por %p543, %p544
      %p546 = scmp.le.s32.totalorder 1, %s32
      %p547 = scmp.lt.s32.totalorder %s32, 3
      %p548 = pnand %p546, %p547
      %p549 = pneg %p548
      // Predicated region
      $region9: #{tpu_custom_call.1} parent=5 // pred_check
        _
      $region10: #{tpu_custom_call.1} parent=5 // pred_check_branch
        %551 = sbr.rel (%p548) target = $region12
      $region11: #{tpu_custom_call.1} parent=5 // pred_region
        %s552 = ssub.s32 %s32, 1
        // Predicated region
        $region13: #{tpu_custom_call.1} parent=11 // pred_check
          %p553 = pneg %p279
        $region14: #{tpu_custom_call.1} parent=11 // pred_check_branch
          %555 = sbr.rel (%p553) target = $region16
        $region15: #{tpu_custom_call.1} parent=11 // pred_region
          _
        $region16: #{tpu_custom_call.1} parent=11 // pred_fallthru
          _
        // Predicated region
        $region17: #{tpu_custom_call.1} parent=11 // pred_check
          %p556 = pneg %p300
        $region18: #{tpu_custom_call.1} parent=11 // pred_check_branch
          %558 = sbr.rel (%p556) target = $region20
        $region19: #{tpu_custom_call.1} parent=11 // pred_region
          _
        $region20: #{tpu_custom_call.1} parent=11 // pred_fallthru
          _
        // Predicated region
        $region21: #{tpu_custom_call.1} parent=11 // pred_check
          %p559 = pneg %p321
        $region22: #{tpu_custom_call.1} parent=11 // pred_check_branch
          %561 = sbr.rel (%p559) target = $region24
        $region23: #{tpu_custom_call.1} parent=11 // pred_region
          _
        $region24: #{tpu_custom_call.1} parent=11 // pred_fallthru
          _
        // Predicated region
        $region25: #{tpu_custom_call.1} parent=11 // pred_check
          %p562 = pneg %p342
        $region26: #{tpu_custom_call.1} parent=11 // pred_check_branch
          %564 = sbr.rel (%p562) target = $region28
        $region27: #{tpu_custom_call.1} parent=11 // pred_region
          _
        $region28: #{tpu_custom_call.1} parent=11 // pred_fallthru
          _
        // Predicated region
        $region29: #{tpu_custom_call.1} parent=11 // pred_check
          %p565 = pneg %p363
        $region30: #{tpu_custom_call.1} parent=11 // pred_check_branch
          %567 = sbr.rel (%p565) target = $region32
        $region31: #{tpu_custom_call.1} parent=11 // pred_region
          _
        $region32: #{tpu_custom_call.1} parent=11 // pred_fallthru
          _
        // Predicated region
        $region33: #{tpu_custom_call.1} parent=11 // pred_check
          %p568 = pneg %p384
        $region34: #{tpu_custom_call.1} parent=11 // pred_check_branch
          %570 = sbr.rel (%p568) target = $region36
        $region35: #{tpu_custom_call.1} parent=11 // pred_region
          _
        $region36: #{tpu_custom_call.1} parent=11 // pred_fallthru
          _
        // Predicated region
        $region37: #{tpu_custom_call.1} parent=11 // pred_check
          %p571 = pneg %p405
        $region38: #{tpu_custom_call.1} parent=11 // pred_check_branch
          %573 = sbr.rel (%p571) target = $region40
        $region39: #{tpu_custom_call.1} parent=11 // pred_region
          _
        $region40: #{tpu_custom_call.1} parent=11 // pred_fallthru
          _
        // Predicated region
        $region41: #{tpu_custom_call.1} parent=11 // pred_check
          %p574 = pneg %p426
        $region42: #{tpu_custom_call.1} parent=11 // pred_check_branch
          %576 = sbr.rel (%p574) target = $region44
        $region43: #{tpu_custom_call.1} parent=11 // pred_region
          _
        $region44: #{tpu_custom_call.1} parent=11 // pred_fallthru
          _
      $region12: #{tpu_custom_call.1} parent=5 // pred_fallthru
        _
      %p577 = scmp.lt.s32.totalorder %s32, 2
      // Predicated region
      $region45: #{tpu_custom_call.1} parent=5 // pred_check
        %p578 = pneg %p577
      $region46: #{tpu_custom_call.1} parent=5 // pred_check_branch
        %580 = sbr.rel (%p578) target = $region48
      $region47: #{tpu_custom_call.1} parent=5 // pred_region
        // Predicated region
        $region49: #{tpu_custom_call.1} parent=47 // pred_check
          %p581 = pneg %p66
        $region50: #{tpu_custom_call.1} parent=47 // pred_check_branch
          %583 = sbr.rel (%p581) target = $region52
        $region51: #{tpu_custom_call.1} parent=47 // pred_region
          %p584 = scmp.lt.s32.totalorder %s39, 1
          %s585 = scalar_select %p584, %s39, 1
          %p586 = scmp.lt.s32.totalorder %s40, 0
          %s587 = scalar_select %p586, %s40, 0
          %s588 = sadd.s32 %s587, %s585
          %s589 = smul.addr %s588, 8
          %s590 = scalar_lea.vmem %s0, %s589
        $region52: #{tpu_custom_call.1} parent=47 // pred_fallthru
          _
        // Predicated region
        $region53: #{tpu_custom_call.1} parent=47 // pred_check
          %p591 = pneg %p92
        $region54: #{tpu_custom_call.1} parent=47 // pred_check_branch
          %593 = sbr.rel (%p591) target = $region56
        $region55: #{tpu_custom_call.1} parent=47 // pred_region
          %p594 = scmp.lt.s32.totalorder %s39, 1
          %s595 = scalar_select %p594, %s39, 1
          %s596 = smul.addr %s595, 8
          %s597 = scalar_lea.vmem %s1, %s596
        $region56: #{tpu_custom_call.1} parent=47 // pred_fallthru
          _
        // Predicated region
        $region57: #{tpu_custom_call.1} parent=47 // pred_check
          %p598 = pneg %p120
        $region58: #{tpu_custom_call.1} parent=47 // pred_check_branch
          %600 = sbr.rel (%p598) target = $region60
        $region59: #{tpu_custom_call.1} parent=47 // pred_region
          %s601 = smul.u32 8, %s40
          %p602 = scmp.lt.s32.totalorder %s39, 1
          %s603 = scalar_select %p602, %s39, 1
          %p604 = scmp.lt.s32.totalorder %s601, 7
          %s605 = scalar_select %p604, %s601, 7
          %s606 = smul.addr %s603, 8
          %s607 = sadd.s32 %s605, %s606
          %s608 = smul.addr %s607, 8
          %s609 = scalar_lea.vmem %s2, %s608
          %s610 = smul.u32 8, %s40
        $region60: #{tpu_custom_call.1} parent=47 // pred_fallthru
          _
        // Predicated region
        $region61: #{tpu_custom_call.1} parent=47 // pred_check
          %p611 = pneg %p146
        $region62: #{tpu_custom_call.1} parent=47 // pred_check_branch
          %613 = sbr.rel (%p611) target = $region64
        $region63: #{tpu_custom_call.1} parent=47 // pred_region
          %p614 = scmp.lt.s32.totalorder %s39, 1
          %s615 = scalar_select %p614, %s39, 1
          %s616 = scalar_lea.vmem %s3, %s615
        $region64: #{tpu_custom_call.1} parent=47 // pred_fallthru
          _
        // Predicated region
        $region65: #{tpu_custom_call.1} parent=47 // pred_check
          %p617 = pneg %p174
        $region66: #{tpu_custom_call.1} parent=47 // pred_check_branch
          %619 = sbr.rel (%p617) target = $region68
        $region67: #{tpu_custom_call.1} parent=47 // pred_region
          %p620 = scmp.lt.s32.totalorder %s39, 1
          %s621 = scalar_select %p620, %s39, 1
          %p622 = scmp.lt.s32.totalorder %s40, 0
          %s623 = scalar_select %p622, %s40, 0
          %s624 = sadd.s32 %s623, %s621
          %s625 = smul.addr %s624, 8
          %s626 = scalar_lea.vmem %s4, %s625
        $region68: #{tpu_custom_call.1} parent=47 // pred_fallthru
          _
        // Predicated region
        $region69: #{tpu_custom_call.1} parent=47 // pred_check
          %p627 = pneg %p200
        $region70: #{tpu_custom_call.1} parent=47 // pred_check_branch
          %629 = sbr.rel (%p627) target = $region72
        $region71: #{tpu_custom_call.1} parent=47 // pred_region
          %p630 = scmp.lt.s32.totalorder %s39, 1
          %s631 = scalar_select %p630, %s39, 1
          %s632 = smul.addr %s631, 8
          %s633 = scalar_lea.vmem %s5, %s632
        $region72: #{tpu_custom_call.1} parent=47 // pred_fallthru
          _
        // Predicated region
        $region73: #{tpu_custom_call.1} parent=47 // pred_check
          %p634 = pneg %p226
        $region74: #{tpu_custom_call.1} parent=47 // pred_check_branch
          %636 = sbr.rel (%p634) target = $region76
        $region75: #{tpu_custom_call.1} parent=47 // pred_region
          %p637 = scmp.lt.s32.totalorder %s39, 1
          %s638 = scalar_select %p637, %s39, 1
          %s639 = smul.addr %s638, 4
          %s640 = smul.addr %s639, 4
          %s641 = scalar_lea.vmem %s6, %s640
        $region76: #{tpu_custom_call.1} parent=47 // pred_fallthru
          _
        // Predicated region
        $region77: #{tpu_custom_call.1} parent=47 // pred_check
          %p642 = pneg %p252
        $region78: #{tpu_custom_call.1} parent=47 // pred_check_branch
          %644 = sbr.rel (%p642) target = $region80
        $region79: #{tpu_custom_call.1} parent=47 // pred_region
          %p645 = scmp.lt.s32.totalorder %s39, 1
          %s646 = scalar_select %p645, %s39, 1
          %s647 = scalar_lea.vmem %s7, %s646
        $region80: #{tpu_custom_call.1} parent=47 // pred_fallthru
          _
      $region48: #{tpu_custom_call.1} parent=5 // pred_fallthru
        _
      %p648 = scmp.le.s32.totalorder 1, %s32
      %p649 = scmp.lt.s32.totalorder %s32, 3
      %p650 = pnand %p648, %p649
      %p651 = pneg %p650
      // Predicated region
      $region81: #{tpu_custom_call.1} parent=5 // pred_check
        _
      $region82: #{tpu_custom_call.1} parent=5 // pred_check_branch
        %653 = sbr.rel (%p650) target = $region84
      $region83: #{tpu_custom_call.1} parent=5 // pred_region
        %s654 = ssub.s32 %s32, 1
        %p655 = scmp.lt.s32.totalorder %s41, 1
        %s656 = scalar_select %p655, %s41, 1
        %p657 = scmp.lt.s32.totalorder %s42, 0
        %s658 = scalar_select %p657, %s42, 0
        %s659 = sadd.s32 %s658, %s656
        %s660 = smul.addr %s659, 8
        %s661 = scalar_lea.vmem %s0, %s660
        %p662 = pneg %p72
        %p663 = pneg %p69
        %p664 = scmp.lt.s32.totalorder %s41, 1
        %s665 = scalar_select %p664, %s41, 1
        %s666 = smul.addr %s665, 8
        %s667 = scalar_lea.vmem %s1, %s666
        %p668 = pneg %p98
        %p669 = pneg %p95
        %s670 = smul.u32 8, %s42
        %p671 = scmp.lt.s32.totalorder %s41, 1
        %s672 = scalar_select %p671, %s41, 1
        %p673 = scmp.lt.s32.totalorder %s670, 7
        %s674 = scalar_select %p673, %s670, 7
        %s675 = smul.addr %s672, 8
        %s676 = sadd.s32 %s674, %s675
        %s677 = smul.addr %s676, 8
        %s678 = scalar_lea.vmem %s2, %s677
        %p679 = pneg %p126
        %p680 = pneg %p123
        %p681 = scmp.lt.s32.totalorder %s41, 1
        %s682 = scalar_select %p681, %s41, 1
        %s683 = scalar_lea.vmem %s3, %s682
        %p684 = pneg %p152
        %p685 = pneg %p149
        %p686 = scmp.lt.s32.totalorder %s41, 1
        %s687 = scalar_select %p686, %s41, 1
        %p688 = scmp.lt.s32.totalorder %s42, 0
        %s689 = scalar_select %p688, %s42, 0
        %s690 = sadd.s32 %s689, %s687
        %s691 = smul.addr %s690, 8
        %s692 = scalar_lea.vmem %s4, %s691
        %p693 = pneg %p180
        %p694 = pneg %p177
        %p695 = scmp.lt.s32.totalorder %s41, 1
        %s696 = scalar_select %p695, %s41, 1
        %s697 = smul.addr %s696, 8
        %s698 = scalar_lea.vmem %s5, %s697
        %p699 = pneg %p206
        %p700 = pneg %p203
        %p701 = scmp.lt.s32.totalorder %s41, 1
        %s702 = scalar_select %p701, %s41, 1
        %s703 = smul.addr %s702, 4
        %s704 = smul.addr %s703, 4
        %s705 = scalar_lea.vmem %s6, %s704
        %p706 = pneg %p232
        %p707 = pneg %p229
        %p708 = scmp.lt.s32.totalorder %s41, 1
        %s709 = scalar_select %p708, %s41, 1
        %s710 = scalar_lea.vmem %s7, %s709
        %p711 = pneg %p258
        %p712 = pneg %p255
        %p713 = pneg %p279
        %p714 = pneg %p276
        %p715 = pneg %p300
        %p716 = pneg %p297
        %p717 = pneg %p321
        %p718 = pneg %p318
        %p719 = pneg %p342
        %p720 = pneg %p339
        %p721 = pneg %p363
        %p722 = pneg %p360
        %p723 = pneg %p384
        %p724 = pneg %p381
        %p725 = pneg %p405
        %p726 = pneg %p402
        %p727 = pneg %p426
        %p728 = pneg %p423
        %p729 = pneg %p454
        %p730 = pneg %p451
        %s731 = smul.u32 8, %s42
        %p732 = scmp.lt.s32.totalorder %s41, 1
        %s733 = scalar_select %p732, %s41, 1
        %p734 = scmp.lt.s32.totalorder %s731, 7
        %s735 = scalar_select %p734, %s731, 7
        %s736 = smul.addr %s733, 8
        %s737 = sadd.s32 %s735, %s736
        %s738 = smul.addr %s737, 8
        %s739 = scalar_lea.vmem %s16, %s738
        %p740 = pneg %p482
        %p741 = pneg %p479
        %s742 = sand.u32 %s469, 1
        %s743 = scalar_lea.sflag [#allocation3], %s742
        %s744 = sand.u32 %s469, 1
        %s745 = smul.addr %s744, 8
        %s746 = scalar_lea.vmem [#allocation2], %s745
        %p747 = pneg %p510
        %p748 = pneg %p507
        %s749 = sand.u32 %s37, 1
        %s750 = scalar_lea.sflag [#allocation5], %s749
        %s751 = sand.u32 %s497, 1
        %s752 = smul.addr %s751, 4
        %s753 = scalar_lea.vmem [#allocation4], %s752
        %p754 = pneg %p538
        %p755 = pneg %p535
        %s756 = sand.u32 %s37, 1
        %s757 = scalar_lea.sflag [#allocation5], %s756
        %s758 = sand.u32 %s525, 1
        %s759 = smul.addr %s758, 4
        %s760 = scalar_lea.vmem [#allocation6], %s759
        %p761 = scmp.lt.s32.totalorder %s41, 1
        %s762 = scalar_select %p761, %s41, 1
        %p763 = scmp.lt.s32.totalorder %s42, 0
        %s764 = scalar_select %p763, %s42, 0
        %s765 = sadd.s32 %s764, %s762
        %s766 = smul.addr %s765, 8
        %s767 = scalar_lea.vmem %s0, %s766
        %p768 = scmp.lt.s32.totalorder %s41, 1
        %s769 = scalar_select %p768, %s41, 1
        %s770 = smul.addr %s769, 8
        %s771 = scalar_lea.vmem %s1, %s770
        %s772 = smul.u32 8, %s42
        %p773 = scmp.lt.s32.totalorder %s41, 1
        %s774 = scalar_select %p773, %s41, 1
        %p775 = scmp.lt.s32.totalorder %s772, 7
        %s776 = scalar_select %p775, %s772, 7
        %s777 = smul.addr %s774, 8
        %s778 = sadd.s32 %s776, %s777
        %s779 = smul.addr %s778, 8
        %s780 = scalar_lea.vmem %s2, %s779
        %s781 = smul.u32 8, %s42
        %p782 = scmp.lt.s32.totalorder %s41, 1
        %s783 = scalar_select %p782, %s41, 1
        %s784 = scalar_lea.vmem %s3, %s783
        %p785 = scmp.lt.s32.totalorder %s41, 1
        %s786 = scalar_select %p785, %s41, 1
        %p787 = scmp.lt.s32.totalorder %s42, 0
        %s788 = scalar_select %p787, %s42, 0
        %s789 = sadd.s32 %s788, %s786
        %s790 = smul.addr %s789, 8
        %s791 = scalar_lea.vmem %s4, %s790
        %p792 = scmp.lt.s32.totalorder %s41, 1
        %s793 = scalar_select %p792, %s41, 1
        %s794 = smul.addr %s793, 8
        %s795 = scalar_lea.vmem %s5, %s794
        %p796 = scmp.lt.s32.totalorder %s41, 1
        %s797 = scalar_select %p796, %s41, 1
        %s798 = smul.addr %s797, 4
        %s799 = smul.addr %s798, 4
        %s800 = scalar_lea.vmem %s6, %s799
        %p801 = scmp.lt.s32.totalorder %s41, 1
        %s802 = scalar_select %p801, %s41, 1
        %s803 = scalar_lea.vmem %s7, %s802
        %s804 = smul.u32 8, %s42
        %p805 = scmp.lt.s32.totalorder %s41, 1
        %s806 = scalar_select %p805, %s41, 1
        %p807 = scmp.lt.s32.totalorder %s804, 7
        %s808 = scalar_select %p807, %s804, 7
        %s809 = smul.addr %s806, 8
        %s810 = sadd.s32 %s808, %s809
        %s811 = smul.addr %s810, 8
        %s812 = scalar_lea.vmem %s16, %s811
        %s813 = smul.u32 8, %s42
        %v815 = vld [vmem:[%s767] sm:$0xff]
        %v816 = vld [vmem:[%s771] sm:$0xff]
        %v817 = vld [vmem:[%s780] sm:$0xff]
        %v818 = vld [vmem:[%s780 + $0x8] sm:$0xff]
        %v819 = vld [vmem:[%s780 + $0x10] sm:$0xff]
        %v820 = vld [vmem:[%s780 + $0x18] sm:$0xff]
        %v821 = vld [vmem:[%s780 + $0x20] sm:$0xff]
        %v822 = vld [vmem:[%s780 + $0x28] sm:$0xff]
        %v823 = vld [vmem:[%s780 + $0x30] sm:$0xff]
        %v824 = vld [vmem:[%s780 + $0x38] sm:$0xff]
        %v825 = vld [vmem:[%s791] sm:$0xff]
        %v826 = vld [vmem:[%s795] sm:$0xff]
        %v827 = vld [vmem:[%s784] sm:$0x1]
        %v828 = vpack.c.bf16 %v815, %v815
        %v829 = vld [vmem:[%s8] sm:$0xf]
        %v830 = vld [vmem:[%s8 + $0x4] sm:$0xf]
        %v831 = vld [vmem:[%s8 + $0x8] sm:$0xf]
        %v832 = vld [vmem:[%s8 + $0xc] sm:$0xf]
        %v833 = vld [vmem:[%s9] sm:$0x1]
        %v835 = vlaneseq
        %v836 = vshrl.u32 %v835, 7
        %v837 = vsub.s32 0, %v836
        %v838 = vrot.slane %v833, %v837
        %v844 = vunpack.c.l.b16 %v829
        %v845 = vunpack.c.l.b16 %v830
        %v846 = vunpack.c.l.b16 %v831
        %v847 = vunpack.c.l.b16 %v832
        %v848 = vpack.c.b16 %v845, %v844
        %v849 = vpack.c.b16 %v847, %v846
        %vm852 = vcmask 261120
        %v854 = vsel %vm852, %v828, 0
        %856 = vmatprep.subr.bf16.mxu0 0
        %857 = vmatpush1.bf16.msra.mxu0 0
        %858 = vmatprep.subr.bf16.mxu0 0
        %859 = vmatpush1.bf16.msra.mxu0 0
        %860 = vmatprep.subr.bf16.mxu0 0
        %861 = vmatpush1.bf16.msra.mxu0 0
        %862 = vmatprep.subr.bf16.mxu0 0
        %863 = vmatpush1.bf16.msra.mxu0 0
        %864 = vmatprep.subr.bf16.mxu0 0
        %865 = vmatpush1.bf16.msra.mxu0 0
        %866 = vmatprep.subr.bf16.mxu0 0
        %867 = vmatpush1.bf16.msra.mxu0 0
        %868 = vmatprep.subr.bf16.mxu0 0
        %869 = vmatpush1.bf16.msra.mxu0 %v849
        %870 = vmatprep.subr.bf16.mxu0 0
        %871 = vmatpush1.bf16.msra.mxu0 %v848
        %872 = vmatprep.subr.bf16.mxu0 0
        %873 = vmatpush2.bf16.msra.mxu0 0
        %874 = vmatprep.subr.bf16.mxu0 0
        %875 = vmatpush2.bf16.msra.mxu0 0
        %876 = vmatprep.subr.bf16.mxu0 0
        %877 = vmatpush2.bf16.msra.mxu0 0
        %878 = vmatprep.subr.bf16.mxu0 0
        %879 = vmatpush2.bf16.msra.mxu0 0
        %880 = vmatprep.subr.bf16.mxu0 0
        %881 = vmatpush2.bf16.msra.mxu0 0
        %882 = vmatprep.subr.bf16.mxu0 0
        %883 = vmatpush2.bf16.msra.mxu0 0
        %884 = vmatprep.subr.bf16.mxu0 0
        %885 = vmatpush2.bf16.msra.mxu0 0
        %886 = vmatprep.subr.bf16.mxu0 0
        %887 = vmatpush2.bf16.msra.mxu0 0
        %888 = vmatprep.mubr.bf16.mxu0 0
        %889 = vmatmul.mubr.bf16.gmra.mxu0 %v854
        %v890 = vpop.f32.mrf.mxu0
        %v891 = vadd.f32 %v838, %v890
        %v892 = vpop.f32.mrf.mxu0
        %v893 = vpop.f32.mrf.mxu0
        %v894 = vpop.f32.mrf.mxu0
        %895 = vdwg.mxu0
        %v896 = vmul.f32 %v891, 0.35355338
        %v897 = vpack.c.bf16 %v816, %v816
        %v898 = vld [vmem:[%s10] sm:$0xf]
        %v899 = vld [vmem:[%s10 + $0x4] sm:$0xf]
        %v900 = vld [vmem:[%s10 + $0x8] sm:$0xf]
        %v901 = vld [vmem:[%s10 + $0xc] sm:$0xf]
        %v902 = vld [vmem:[%s11] sm:$0x1]
        %v904 = vlaneseq
        %v905 = vshrl.u32 %v904, 7
        %v906 = vsub.s32 0, %v905
        %v907 = vrot.slane %v902, %v906
        %v913 = vunpack.c.l.b16 %v898
        %v914 = vunpack.c.l.b16 %v899
        %v915 = vunpack.c.l.b16 %v900
        %v916 = vunpack.c.l.b16 %v901
        %v917 = vpack.c.b16 %v914, %v913
        %v918 = vpack.c.b16 %v916, %v915
        %v922 = vsel %vm852, %v897, 0
        %924 = vmatprep.subr.bf16.mxu0 0
        %925 = vmatpush1.bf16.msra.mxu0 0
        %926 = vmatprep.subr.bf16.mxu0 0
        %927 = vmatpush1.bf16.msra.mxu0 0
        %928 = vmatprep.subr.bf16.mxu0 0
        %929 = vmatpush1.bf16.msra.mxu0 0
        %930 = vmatprep.subr.bf16.mxu0 0
        %931 = vmatpush1.bf16.msra.mxu0 0
        %932 = vmatprep.subr.bf16.mxu0 0
        %933 = vmatpush1.bf16.msra.mxu0 0
        %934 = vmatprep.subr.bf16.mxu0 0
        %935 = vmatpush1.bf16.msra.mxu0 0
        %936 = vmatprep.subr.bf16.mxu0 0
        %937 = vmatpush1.bf16.msra.mxu0 %v918
        %938 = vmatprep.subr.bf16.mxu0 0
        %939 = vmatpush1.bf16.msra.mxu0 %v917
        %940 = vmatprep.subr.bf16.mxu0 0
        %941 = vmatpush2.bf16.msra.mxu0 0
        %942 = vmatprep.subr.bf16.mxu0 0
        %943 = vmatpush2.bf16.msra.mxu0 0
        %944 = vmatprep.subr.bf16.mxu0 0
        %945 = vmatpush2.bf16.msra.mxu0 0
        %946 = vmatprep.subr.bf16.mxu0 0
        %947 = vmatpush2.bf16.msra.mxu0 0
        %948 = vmatprep.subr.bf16.mxu0 0
        %949 = vmatpush2.bf16.msra.mxu0 0
        %950 = vmatprep.subr.bf16.mxu0 0
        %951 = vmatpush2.bf16.msra.mxu0 0
        %952 = vmatprep.subr.bf16.mxu0 0
        %953 = vmatpush2.bf16.msra.mxu0 0
        %954 = vmatprep.subr.bf16.mxu0 0
        %955 = vmatpush2.bf16.msra.mxu0 0
        %956 = vmatprep.mubr.bf16.mxu0 0
        %957 = vmatmul.mubr.bf16.gmra.mxu0 %v922
        %v958 = vpop.f32.mrf.mxu0
        %v959 = vadd.f32 %v907, %v958
        %v960 = vpop.f32.mrf.mxu0
        %v961 = vpop.f32.mrf.mxu0
        %v962 = vpop.f32.mrf.mxu0
        %963 = vdwg.mxu0
        %v964 = vpack.c.bf16 %v818, %v817
        %v965 = vpack.c.bf16 %v820, %v819
        %v966 = vpack.c.bf16 %v822, %v821
        %v967 = vpack.c.bf16 %v824, %v823
        %v968 = vld [vmem:[%s12] sm:$0xf]
        %v969 = vld [vmem:[%s12 + $0x4] sm:$0xf]
        %v970 = vld [vmem:[%s13] sm:$0x1]
        %v972 = vlaneseq
        %v973 = vshrl.u32 %v972, 7
        %v974 = vsub.s32 0, %v973
        %v975 = vrot.slane %v970, %v974
        %v979 = vunpack.c.l.b16 %v968
        %v980 = vunpack.c.l.b16 %v969
        %v981 = vpack.c.b16 %v980, %v979
        %vm983 = vcmask 130048
        %v985 = vsel %vm983, %v964, 0
        %v988 = vsel %vm983, %v965, 0
        %v991 = vsel %vm983, %v966, 0
        %v994 = vsel %vm983, %v967, 0
        %996 = vmatprep.subr.bf16.mxu0 0
        %997 = vmatpush1.bf16.msra.mxu0 0
        %998 = vmatprep.subr.bf16.mxu0 0
        %999 = vmatpush1.bf16.msra.mxu0 0
        %1000 = vmatprep.subr.bf16.mxu0 0
        %1001 = vmatpush1.bf16.msra.mxu0 0
        %1002 = vmatprep.subr.bf16.mxu0 0
        %1003 = vmatpush1.bf16.msra.mxu0 0
        %1004 = vmatprep.subr.bf16.mxu0 0
        %1005 = vmatpush1.bf16.msra.mxu0 0
        %1006 = vmatprep.subr.bf16.mxu0 0
        %1007 = vmatpush1.bf16.msra.mxu0 0
        %1008 = vmatprep.subr.bf16.mxu0 0
        %1009 = vmatpush1.bf16.msra.mxu0 0
        %1010 = vmatprep.subr.bf16.mxu0 0
        %1011 = vmatpush1.bf16.msra.mxu0 %v981
        %1012 = vmatprep.subr.bf16.mxu0 0
        %1013 = vmatpush2.bf16.msra.mxu0 0
        %1014 = vmatprep.subr.bf16.mxu0 0
        %1015 = vmatpush2.bf16.msra.mxu0 0
        %1016 = vmatprep.subr.bf16.mxu0 0
        %1017 = vmatpush2.bf16.msra.mxu0 0
        %1018 = vmatprep.subr.bf16.mxu0 0
        %1019 = vmatpush2.bf16.msra.mxu0 0
        %1020 = vmatprep.subr.bf16.mxu0 0
        %1021 = vmatpush2.bf16.msra.mxu0 0
        %1022 = vmatprep.subr.bf16.mxu0 0
        %1023 = vmatpush2.bf16.msra.mxu0 0
        %1024 = vmatprep.subr.bf16.mxu0 0
        %1025 = vmatpush2.bf16.msra.mxu0 0
        %1026 = vmatprep.subr.bf16.mxu0 0
        %1027 = vmatpush2.bf16.msra.mxu0 0
        %1028 = vmatprep.mubr.bf16.mxu0 0
        %1029 = vmatmul.mubr.bf16.gmra.mxu0 %v985
        %v1030 = vpop.f32.mrf.mxu0
        %v1031 = vadd.f32 %v975, %v1030
        %v1032 = vpop.f32.mrf.mxu0
        %v1033 = vpop.f32.mrf.mxu0
        %v1034 = vadd.f32 %v975, %v1033
        %v1035 = vpop.f32.mrf.mxu0
        %1036 = vmatprep.mubr.bf16.mxu0 0
        %1037 = vmatmul.mubr.bf16.gmra.mxu0 %v988
        %v1038 = vpop.f32.mrf.mxu0
        %v1039 = vadd.f32 %v975, %v1038
        %v1040 = vpop.f32.mrf.mxu0
        %v1041 = vpop.f32.mrf.mxu0
        %v1042 = vadd.f32 %v975, %v1041
        %v1043 = vpop.f32.mrf.mxu0
        %1044 = vmatprep.mubr.bf16.mxu0 0
        %1045 = vmatmul.mubr.bf16.gmra.mxu0 %v991
        %v1046 = vpop.f32.mrf.mxu0
        %v1047 = vadd.f32 %v975, %v1046
        %v1048 = vpop.f32.mrf.mxu0
        %v1049 = vpop.f32.mrf.mxu0
        %v1050 = vadd.f32 %v975, %v1049
        %v1051 = vpop.f32.mrf.mxu0
        %1052 = vmatprep.mubr.bf16.mxu0 0
        %1053 = vmatmul.mubr.bf16.gmra.mxu0 %v994
        %v1054 = vpop.f32.mrf.mxu0
        %v1055 = vadd.f32 %v975, %v1054
        %v1056 = vpop.f32.mrf.mxu0
        %v1057 = vpop.f32.mrf.mxu0
        %v1058 = vadd.f32 %v975, %v1057
        %v1059 = vpop.f32.mrf.mxu0
        %1060 = vdwg.mxu0
        %v1062 = vcombine.high %v896, %v896
        %v1064 = vunpack.c.l.s4 1966171168
        %v1065 = vunpack.c.0.s8 %v1064
        %v1066 = vlaneseq
        %v1067 = vshrl.u32 %v1066, 7
        %v1068 = vsub.s32 %v1065, %v1067
        %v1069 = vrot.slane %v896, %v1068
        %v1071 = vunpack.c.l.s4 1966171168
        %v1072 = vunpack.c.0.s8 %v1071
        %v1073 = vlaneseq
        %v1074 = vshrl.u32 %v1073, 7
        %v1075 = vsub.s32 %v1072, %v1074
        %v1076 = vrot.slane %v1062, %v1075
        %v1077 = vcombine.high %v1069, %v1069
        %v1078 = vcombine.high %v1076, %v1076
        %v1080 = vunpack.c.l.s4 1966171168
        %v1081 = vunpack.c.0.s8 %v1080
        %v1082 = vlaneseq
        %v1083 = vshrl.u32 %v1082, 7
        %v1084 = vsub.s32 %v1081, %v1083
        %v1085 = vrot.slane %v1069, %v1084
        %v1087 = vunpack.c.l.s4 1966171168
        %v1088 = vunpack.c.0.s8 %v1087
        %v1089 = vlaneseq
        %v1090 = vshrl.u32 %v1089, 7
        %v1091 = vsub.s32 %v1088, %v1090
        %v1092 = vrot.slane %v1076, %v1091
        %v1094 = vunpack.c.l.s4 1966171168
        %v1095 = vunpack.c.0.s8 %v1094
        %v1096 = vlaneseq
        %v1097 = vshrl.u32 %v1096, 7
        %v1098 = vsub.s32 %v1095, %v1097
        %v1099 = vrot.slane %v1077, %v1098
        %v1101 = vunpack.c.l.s4 1966171168
        %v1102 = vunpack.c.0.s8 %v1101
        %v1103 = vlaneseq
        %v1104 = vshrl.u32 %v1103, 7
        %v1105 = vsub.s32 %v1102, %v1104
        %v1106 = vrot.slane %v1078, %v1105
        %v1107 = vcombine.high %v1085, %v1085
        %v1108 = vcombine.high %v1092, %v1092
        %v1109 = vcombine.high %v1099, %v1099
        %v1110 = vcombine.high %v1106, %v1106
        %v1111 = vlaneseq
        %v1112 = vshrl.u32 %v1111, 7
        %v1113 = vsub.s32 0, %v1112
        %v1114 = vrot.slane %v1085, %v1113
        %v1115 = vlaneseq
        %v1116 = vshrl.u32 %v1115, 7
        %v1117 = vsub.s32 0, %v1116
        %v1118 = vrot.slane %v1099, %v1117
        %v1119 = vlaneseq
        %v1120 = vshrl.u32 %v1119, 7
        %v1121 = vsub.s32 0, %v1120
        %v1122 = vrot.slane %v1107, %v1121
        %v1123 = vlaneseq
        %v1124 = vshrl.u32 %v1123, 7
        %v1125 = vsub.s32 0, %v1124
        %v1126 = vrot.slane %v1109, %v1125
        %v1127 = vlaneseq
        %v1128 = vshrl.u32 %v1127, 7
        %v1129 = vsub.s32 0, %v1128
        %v1130 = vrot.slane %v1092, %v1129
        %v1131 = vlaneseq
        %v1132 = vshrl.u32 %v1131, 7
        %v1133 = vsub.s32 0, %v1132
        %v1134 = vrot.slane %v1106, %v1133
        %v1135 = vlaneseq
        %v1136 = vshrl.u32 %v1135, 7
        %v1137 = vsub.s32 0, %v1136
        %v1138 = vrot.slane %v1108, %v1137
        %v1139 = vlaneseq
        %v1140 = vshrl.u32 %v1139, 7
        %v1141 = vsub.s32 0, %v1140
        %v1142 = vrot.slane %v1110, %v1141
        %v1151 = vmul.f32 %v1114, %v959
        %v1152 = vmul.f32 %v1118, %v959
        %v1153 = vmul.f32 %v1122, %v959
        %v1154 = vmul.f32 %v1126, %v959
        %v1155 = vmul.f32 %v1130, %v959
        %v1156 = vmul.f32 %v1134, %v959
        %v1157 = vmul.f32 %v1138, %v959
        %v1158 = vmul.f32 %v1142, %v959
        %v1159 = vadd.f32 %v1031, 1.0
        %v1160 = vadd.f32 %v1034, 1.0
        %v1161 = vadd.f32 %v1039, 1.0
        %v1162 = vadd.f32 %v1042, 1.0
        %v1163 = vadd.f32 %v1047, 1.0
        %v1164 = vadd.f32 %v1050, 1.0
        %v1165 = vadd.f32 %v1055, 1.0
        %v1166 = vadd.f32 %v1058, 1.0
        %v1167 = vmul.f32 %v1151, %v1159
        %v1168 = vmul.f32 %v1152, %v1160
        %v1169 = vmul.f32 %v1153, %v1161
        %v1170 = vmul.f32 %v1154, %v1162
        %v1171 = vmul.f32 %v1155, %v1163
        %v1172 = vmul.f32 %v1156, %v1164
        %v1173 = vmul.f32 %v1157, %v1165
        %v1174 = vmul.f32 %v1158, %v1166
        %1183 = vrot.lane.b32.xlu0 %v1031, 96
        %v1184 = vpop.permute.xlu0 %1183
        %1185 = vrot.lane.b32.xlu0 %v1034, 96
        %v1186 = vpop.permute.xlu0 %1185
        %1187 = vrot.lane.b32.xlu0 %v1039, 96
        %v1188 = vpop.permute.xlu0 %1187
        %1189 = vrot.lane.b32.xlu0 %v1042, 96
        %v1190 = vpop.permute.xlu0 %1189
        %1191 = vrot.lane.b32.xlu0 %v1047, 96
        %v1192 = vpop.permute.xlu0 %1191
        %1193 = vrot.lane.b32.xlu0 %v1050, 96
        %v1194 = vpop.permute.xlu0 %1193
        %1195 = vrot.lane.b32.xlu0 %v1055, 96
        %v1196 = vpop.permute.xlu0 %1195
        %1197 = vrot.lane.b32.xlu0 %v1058, 96
        %v1198 = vpop.permute.xlu0 %1197
        %v1207 = vadd.f32 %v1167, %v1184
        %v1208 = vadd.f32 %v1168, %v1186
        %v1209 = vadd.f32 %v1169, %v1188
        %v1210 = vadd.f32 %v1170, %v1190
        %v1211 = vadd.f32 %v1171, %v1192
        %v1212 = vadd.f32 %v1172, %v1194
        %v1213 = vadd.f32 %v1173, %v1196
        %v1214 = vadd.f32 %v1174, %v1198
        %v1215 = vpack.c.bf16 %v1208, %v1207
        %v1216 = vpack.c.bf16 %v1210, %v1209
        %v1217 = vpack.c.bf16 %v1212, %v1211
        %v1218 = vpack.c.bf16 %v1214, %v1213
        %v1219 = vld [vmem:[%s800] sm:$0xf]
        %v1220 = vld [vmem:[%s800 + $0x4] sm:$0xf]
        %v1221 = vld [vmem:[%s800 + $0x8] sm:$0xf]
        %v1222 = vld [vmem:[%s800 + $0xc] sm:$0xf]
        %v1223 = vld [vmem:[%s803] sm:$0x1]
        %v1225 = vlaneseq
        %v1226 = vshrl.u32 %v1225, 7
        %v1227 = vsub.s32 0, %v1226
        %v1228 = vrot.slane %v1223, %v1227
        %v1234 = vunpack.c.l.b16 %v1219
        %v1235 = vunpack.c.l.b16 %v1220
        %v1236 = vunpack.c.l.b16 %v1221
        %v1237 = vunpack.c.l.b16 %v1222
        %v1238 = vpack.c.b16 %v1235, %v1234
        %v1239 = vpack.c.b16 %v1237, %v1236
        %v1243 = vsel %vm852, %v1215, 0
        %v1246 = vsel %vm852, %v1216, 0
        %v1249 = vsel %vm852, %v1217, 0
        %v1252 = vsel %vm852, %v1218, 0
        %1254 = vmatprep.subr.bf16.mxu0 0
        %1255 = vmatpush1.bf16.msra.mxu0 0
        %1256 = vmatprep.subr.bf16.mxu0 0
        %1257 = vmatpush1.bf16.msra.mxu0 0
        %1258 = vmatprep.subr.bf16.mxu0 0
        %1259 = vmatpush1.bf16.msra.mxu0 0
        %1260 = vmatprep.subr.bf16.mxu0 0
        %1261 = vmatpush1.bf16.msra.mxu0 0
        %1262 = vmatprep.subr.bf16.mxu0 0
        %1263 = vmatpush1.bf16.msra.mxu0 0
        %1264 = vmatprep.subr.bf16.mxu0 0
        %1265 = vmatpush1.bf16.msra.mxu0 0
        %1266 = vmatprep.subr.bf16.mxu0 0
        %1267 = vmatpush1.bf16.msra.mxu0 %v1239
        %1268 = vmatprep.subr.bf16.mxu0 0
        %1269 = vmatpush1.bf16.msra.mxu0 %v1238
        %1270 = vmatprep.subr.bf16.mxu0 0
        %1271 = vmatpush2.bf16.msra.mxu0 0
        %1272 = vmatprep.subr.bf16.mxu0 0
        %1273 = vmatpush2.bf16.msra.mxu0 0
        %1274 = vmatprep.subr.bf16.mxu0 0
        %1275 = vmatpush2.bf16.msra.mxu0 0
        %1276 = vmatprep.subr.bf16.mxu0 0
        %1277 = vmatpush2.bf16.msra.mxu0 0
        %1278 = vmatprep.subr.bf16.mxu0 0
        %1279 = vmatpush2.bf16.msra.mxu0 0
        %1280 = vmatprep.subr.bf16.mxu0 0
        %1281 = vmatpush2.bf16.msra.mxu0 0
        %1282 = vmatprep.subr.bf16.mxu0 0
        %1283 = vmatpush2.bf16.msra.mxu0 0
        %1284 = vmatprep.subr.bf16.mxu0 0
        %1285 = vmatpush2.bf16.msra.mxu0 0
        %1286 = vmatprep.mubr.bf16.mxu0 0
        %1287 = vmatmul.mubr.bf16.gmra.mxu0 %v1243
        %v1288 = vpop.f32.mrf.mxu0
        %v1289 = vadd.f32 %v1228, %v1288
        %v1290 = vpop.f32.mrf.mxu0
        %v1291 = vpop.f32.mrf.mxu0
        %v1292 = vadd.f32 %v1228, %v1291
        %v1293 = vpop.f32.mrf.mxu0
        %1294 = vmatprep.mubr.bf16.mxu0 0
        %1295 = vmatmul.mubr.bf16.gmra.mxu0 %v1246
        %v1296 = vpop.f32.mrf.mxu0
        %v1297 = vadd.f32 %v1228, %v1296
        %v1298 = vpop.f32.mrf.mxu0
        %v1299 = vpop.f32.mrf.mxu0
        %v1300 = vadd.f32 %v1228, %v1299
        %v1301 = vpop.f32.mrf.mxu0
        %1302 = vmatprep.mubr.bf16.mxu0 0
        %1303 = vmatmul.mubr.bf16.gmra.mxu0 %v1249
        %v1304 = vpop.f32.mrf.mxu0
        %v1305 = vadd.f32 %v1228, %v1304
        %v1306 = vpop.f32.mrf.mxu0
        %v1307 = vpop.f32.mrf.mxu0
        %v1308 = vadd.f32 %v1228, %v1307
        %v1309 = vpop.f32.mrf.mxu0
        %1310 = vmatprep.mubr.bf16.mxu0 0
        %1311 = vmatmul.mubr.bf16.gmra.mxu0 %v1252
        %v1312 = vpop.f32.mrf.mxu0
        %v1313 = vadd.f32 %v1228, %v1312
        %v1314 = vpop.f32.mrf.mxu0
        %v1315 = vpop.f32.mrf.mxu0
        %v1316 = vadd.f32 %v1228, %v1315
        %v1317 = vpop.f32.mrf.mxu0
        %1318 = vdwg.mxu0
        %v1320 = vcombine.high %v825, %v825
        %v1322 = vunpack.c.l.s4 1966171168
        %v1323 = vunpack.c.0.s8 %v1322
        %v1324 = vlaneseq
        %v1325 = vshrl.u32 %v1324, 7
        %v1326 = vsub.s32 %v1323, %v1325
        %v1327 = vrot.slane %v825, %v1326
        %v1329 = vunpack.c.l.s4 1966171168
        %v1330 = vunpack.c.0.s8 %v1329
        %v1331 = vlaneseq
        %v1332 = vshrl.u32 %v1331, 7
        %v1333 = vsub.s32 %v1330, %v1332
        %v1334 = vrot.slane %v1320, %v1333
        %v1335 = vcombine.high %v1327, %v1327
        %v1336 = vcombine.high %v1334, %v1334
        %v1338 = vunpack.c.l.s4 1966171168
        %v1339 = vunpack.c.0.s8 %v1338
        %v1340 = vlaneseq
        %v1341 = vshrl.u32 %v1340, 7
        %v1342 = vsub.s32 %v1339, %v1341
        %v1343 = vrot.slane %v1327, %v1342
        %v1345 = vunpack.c.l.s4 1966171168
        %v1346 = vunpack.c.0.s8 %v1345
        %v1347 = vlaneseq
        %v1348 = vshrl.u32 %v1347, 7
        %v1349 = vsub.s32 %v1346, %v1348
        %v1350 = vrot.slane %v1334, %v1349
        %v1352 = vunpack.c.l.s4 1966171168
        %v1353 = vunpack.c.0.s8 %v1352
        %v1354 = vlaneseq
        %v1355 = vshrl.u32 %v1354, 7
        %v1356 = vsub.s32 %v1353, %v1355
        %v1357 = vrot.slane %v1335, %v1356
        %v1359 = vunpack.c.l.s4 1966171168
        %v1360 = vunpack.c.0.s8 %v1359
        %v1361 = vlaneseq
        %v1362 = vshrl.u32 %v1361, 7
        %v1363 = vsub.s32 %v1360, %v1362
        %v1364 = vrot.slane %v1336, %v1363
        %v1365 = vcombine.high %v1343, %v1343
        %v1366 = vcombine.high %v1350, %v1350
        %v1367 = vcombine.high %v1357, %v1357
        %v1368 = vcombine.high %v1364, %v1364
        %v1369 = vlaneseq
        %v1370 = vshrl.u32 %v1369, 7
        %v1371 = vsub.s32 0, %v1370
        %v1372 = vrot.slane %v1343, %v1371
        %v1373 = vlaneseq
        %v1374 = vshrl.u32 %v1373, 7
        %v1375 = vsub.s32 0, %v1374
        %v1376 = vrot.slane %v1357, %v1375
        %v1377 = vlaneseq
        %v1378 = vshrl.u32 %v1377, 7
        %v1379 = vsub.s32 0, %v1378
        %v1380 = vrot.slane %v1365, %v1379
        %v1381 = vlaneseq
        %v1382 = vshrl.u32 %v1381, 7
        %v1383 = vsub.s32 0, %v1382
        %v1384 = vrot.slane %v1367, %v1383
        %v1385 = vlaneseq
        %v1386 = vshrl.u32 %v1385, 7
        %v1387 = vsub.s32 0, %v1386
        %v1388 = vrot.slane %v1350, %v1387
        %v1389 = vlaneseq
        %v1390 = vshrl.u32 %v1389, 7
        %v1391 = vsub.s32 0, %v1390
        %v1392 = vrot.slane %v1364, %v1391
        %v1393 = vlaneseq
        %v1394 = vshrl.u32 %v1393, 7
        %v1395 = vsub.s32 0, %v1394
        %v1396 = vrot.slane %v1366, %v1395
        %v1397 = vlaneseq
        %v1398 = vshrl.u32 %v1397, 7
        %v1399 = vsub.s32 0, %v1398
        %v1400 = vrot.slane %v1368, %v1399
        %v1409 = vmul.f32 %v1372, %v826
        %v1410 = vmul.f32 %v1376, %v826
        %v1411 = vmul.f32 %v1380, %v826
        %v1412 = vmul.f32 %v1384, %v826
        %v1413 = vmul.f32 %v1388, %v826
        %v1414 = vmul.f32 %v1392, %v826
        %v1415 = vmul.f32 %v1396, %v826
        %v1416 = vmul.f32 %v1400, %v826
        %1418 = vset.pattern.permute.xlu0 0
        %1419 = vperm.xlu0 %1418, %v1409
        %v1420 = vpop.permute.xlu0 %1419
        %1423 = vset.pattern.permute.xlu0 0
        %1424 = vperm.xlu0 %1423, %v1410
        %v1425 = vpop.permute.xlu0 %1424
        %1428 = vset.pattern.permute.xlu0 0
        %1429 = vperm.xlu0 %1428, %v1411
        %v1430 = vpop.permute.xlu0 %1429
        %1433 = vset.pattern.permute.xlu0 0
        %1434 = vperm.xlu0 %1433, %v1412
        %v1435 = vpop.permute.xlu0 %1434
        %1438 = vset.pattern.permute.xlu0 0
        %1439 = vperm.xlu0 %1438, %v1413
        %v1440 = vpop.permute.xlu0 %1439
        %1443 = vset.pattern.permute.xlu0 0
        %1444 = vperm.xlu0 %1443, %v1414
        %v1445 = vpop.permute.xlu0 %1444
        %1448 = vset.pattern.permute.xlu0 0
        %1449 = vperm.xlu0 %1448, %v1415
        %v1450 = vpop.permute.xlu0 %1449
        %1453 = vset.pattern.permute.xlu0 0
        %1454 = vperm.xlu0 %1453, %v1416
        %v1455 = vpop.permute.xlu0 %1454
        %v1457 = vmul.f32 %v1289, %v1420
        %v1458 = vmul.f32 %v1292, %v1425
        %v1459 = vmul.f32 %v1297, %v1430
        %v1460 = vmul.f32 %v1300, %v1435
        %v1461 = vmul.f32 %v1305, %v1440
        %v1462 = vmul.f32 %v1308, %v1445
        %v1463 = vmul.f32 %v1313, %v1450
        %v1464 = vmul.f32 %v1316, %v1455
        %1465 = vst.msk [vmem:[%s812] sm:$0xff] %vm983, %v1457
        %1466 = vst.msk [vmem:[%s812 + $0x8] sm:$0xff] %vm983, %v1458
        %1467 = vst.msk [vmem:[%s812 + $0x10] sm:$0xff] %vm983, %v1459
        %1468 = vst.msk [vmem:[%s812 + $0x18] sm:$0xff] %vm983, %v1460
        %1469 = vst.msk [vmem:[%s812 + $0x20] sm:$0xff] %vm983, %v1461
        %1470 = vst.msk [vmem:[%s812 + $0x28] sm:$0xff] %vm983, %v1462
        %1471 = vst.msk [vmem:[%s812 + $0x30] sm:$0xff] %vm983, %v1463
        %1472 = vst.msk [vmem:[%s812 + $0x38] sm:$0xff] %vm983, %v1464
        %vm1473 = vcmp.gt.f32.partialorder %v826, 0.0
        %v1474 = vsel %vm1473, 1, 0
        %1475 = vset.pattern.permute.xlu0 0
        %1476 = vperm.xlu0 %1475, %v1474
        %v1477 = vpop.permute.xlu0 %1476
        %vm1478 = vcmp.eq.s32.totalorder %v1477, 1
        %v1479 = vsel %vm1478, %v1207, -1e+30
        %v1480 = vsel %vm1478, %v1208, -1e+30
        %v1481 = vsel %vm1478, %v1209, -1e+30
        %v1482 = vsel %vm1478, %v1210, -1e+30
        %v1483 = vsel %vm1478, %v1211, -1e+30
        %v1484 = vsel %vm1478, %v1212, -1e+30
        %v1485 = vsel %vm1478, %v1213, -1e+30
        %v1486 = vsel %vm1478, %v1214, -1e+30
        %v1487 = vsel %vm852, %v1479, -inf
        %v1488 = vrot.slane %v1487, 4
        %v1489 = vmax.f32 %v1487, %v1488
        %v1490 = vrot.slane %v1489, 2
        %v1491 = vmax.f32 %v1489, %v1490
        %v1492 = vrot.slane %v1491, 1
        %v1493 = vmax.f32 %v1491, %v1492
        %v1494 = vsel %vm852, %v1480, -inf
        %v1495 = vrot.slane %v1494, 4
        %v1496 = vmax.f32 %v1494, %v1495
        %v1497 = vrot.slane %v1496, 2
        %v1498 = vmax.f32 %v1496, %v1497
        %v1499 = vrot.slane %v1498, 1
        %v1500 = vmax.f32 %v1498, %v1499
        %v1501 = vsel %vm852, %v1481, -inf
        %v1502 = vrot.slane %v1501, 4
        %v1503 = vmax.f32 %v1501, %v1502
        %v1504 = vrot.slane %v1503, 2
        %v1505 = vmax.f32 %v1503, %v1504
        %v1506 = vrot.slane %v1505, 1
        %v1507 = vmax.f32 %v1505, %v1506
        %v1508 = vsel %vm852, %v1482, -inf
        %v1509 = vrot.slane %v1508, 4
        %v1510 = vmax.f32 %v1508, %v1509
        %v1511 = vrot.slane %v1510, 2
        %v1512 = vmax.f32 %v1510, %v1511
        %v1513 = vrot.slane %v1512, 1
        %v1514 = vmax.f32 %v1512, %v1513
        %v1515 = vsel %vm852, %v1483, -inf
        %v1516 = vrot.slane %v1515, 4
        %v1517 = vmax.f32 %v1515, %v1516
        %v1518 = vrot.slane %v1517, 2
        %v1519 = vmax.f32 %v1517, %v1518
        %v1520 = vrot.slane %v1519, 1
        %v1521 = vmax.f32 %v1519, %v1520
        %v1522 = vsel %vm852, %v1484, -inf
        %v1523 = vrot.slane %v1522, 4
        %v1524 = vmax.f32 %v1522, %v1523
        %v1525 = vrot.slane %v1524, 2
        %v1526 = vmax.f32 %v1524, %v1525
        %v1527 = vrot.slane %v1526, 1
        %v1528 = vmax.f32 %v1526, %v1527
        %v1529 = vsel %vm852, %v1485, -inf
        %v1530 = vrot.slane %v1529, 4
        %v1531 = vmax.f32 %v1529, %v1530
        %v1532 = vrot.slane %v1531, 2
        %v1533 = vmax.f32 %v1531, %v1532
        %v1534 = vrot.slane %v1533, 1
        %v1535 = vmax.f32 %v1533, %v1534
        %v1536 = vsel %vm852, %v1486, -inf
        %v1537 = vrot.slane %v1536, 4
        %v1538 = vmax.f32 %v1536, %v1537
        %v1539 = vrot.slane %v1538, 2
        %v1540 = vmax.f32 %v1538, %v1539
        %v1541 = vrot.slane %v1540, 1
        %v1542 = vmax.f32 %v1540, %v1541
        %v1543 = vsub.f32 %v1479, %v1493
        %v1544 = vsub.f32 %v1480, %v1500
        %v1545 = vsub.f32 %v1481, %v1507
        %v1546 = vsub.f32 %v1482, %v1514
        %v1547 = vsub.f32 %v1483, %v1521
        %v1548 = vsub.f32 %v1484, %v1528
        %v1549 = vsub.f32 %v1485, %v1535
        %v1550 = vsub.f32 %v1486, %v1542
        %v1551 = vmul.f32 %v1543, 1.442695
        %v1552 = vpow.pop %v1551
        %v1553 = vmul.f32 %v1544, 1.442695
        %v1554 = vpow.pop %v1553
        %v1555 = vmul.f32 %v1545, 1.442695
        %v1556 = vpow.pop %v1555
        %v1557 = vmul.f32 %v1546, 1.442695
        %v1558 = vpow.pop %v1557
        %v1559 = vmul.f32 %v1547, 1.442695
        %v1560 = vpow.pop %v1559
        %v1561 = vmul.f32 %v1548, 1.442695
        %v1562 = vpow.pop %v1561
        %v1563 = vmul.f32 %v1549, 1.442695
        %v1564 = vpow.pop %v1563
        %v1565 = vmul.f32 %v1550, 1.442695
        %v1566 = vpow.pop %v1565
        %v1567 = vsel %vm852, %v1552, 0.0
        %v1568 = vrot.slane %v1567, 4
        %v1569 = vadd.f32 %v1567, %v1568
        %v1570 = vrot.slane %v1569, 2
        %v1571 = vadd.f32 %v1569, %v1570
        %v1572 = vrot.slane %v1571, 1
        %v1573 = vadd.f32 %v1571, %v1572
        %v1574 = vsel %vm852, %v1554, 0.0
        %v1575 = vrot.slane %v1574, 4
        %v1576 = vadd.f32 %v1574, %v1575
        %v1577 = vrot.slane %v1576, 2
        %v1578 = vadd.f32 %v1576, %v1577
        %v1579 = vrot.slane %v1578, 1
        %v1580 = vadd.f32 %v1578, %v1579
        %v1581 = vsel %vm852, %v1556, 0.0
        %v1582 = vrot.slane %v1581, 4
        %v1583 = vadd.f32 %v1581, %v1582
        %v1584 = vrot.slane %v1583, 2
        %v1585 = vadd.f32 %v1583, %v1584
        %v1586 = vrot.slane %v1585, 1
        %v1587 = vadd.f32 %v1585, %v1586
        %v1588 = vsel %vm852, %v1558, 0.0
        %v1589 = vrot.slane %v1588, 4
        %v1590 = vadd.f32 %v1588, %v1589
        %v1591 = vrot.slane %v1590, 2
        %v1592 = vadd.f32 %v1590, %v1591
        %v1593 = vrot.slane %v1592, 1
        %v1594 = vadd.f32 %v1592, %v1593
        %v1595 = vsel %vm852, %v1560, 0.0
        %v1596 = vrot.slane %v1595, 4
        %v1597 = vadd.f32 %v1595, %v1596
        %v1598 = vrot.slane %v1597, 2
        %v1599 = vadd.f32 %v1597, %v1598
        %v1600 = vrot.slane %v1599, 1
        %v1601 = vadd.f32 %v1599, %v1600
        %v1602 = vsel %vm852, %v1562, 0.0
        %v1603 = vrot.slane %v1602, 4
        %v1604 = vadd.f32 %v1602, %v1603
        %v1605 = vrot.slane %v1604, 2
        %v1606 = vadd.f32 %v1604, %v1605
        %v1607 = vrot.slane %v1606, 1
        %v1608 = vadd.f32 %v1606, %v1607
        %v1609 = vsel %vm852, %v1564, 0.0
        %v1610 = vrot.slane %v1609, 4
        %v1611 = vadd.f32 %v1609, %v1610
        %v1612 = vrot.slane %v1611, 2
        %v1613 = vadd.f32 %v1611, %v1612
        %v1614 = vrot.slane %v1613, 1
        %v1615 = vadd.f32 %v1613, %v1614
        %v1616 = vsel %vm852, %v1566, 0.0
        %v1617 = vrot.slane %v1616, 4
        %v1618 = vadd.f32 %v1616, %v1617
        %v1619 = vrot.slane %v1618, 2
        %v1620 = vadd.f32 %v1618, %v1619
        %v1621 = vrot.slane %v1620, 1
        %v1622 = vadd.f32 %v1620, %v1621
        %1624 = vrot.lane.b32.xlu0 %v959, 96
        %v1625 = vpop.permute.xlu0 %1624
        %v1627 = vmul.f32 %v1552, %v1625
        %v1628 = vmul.f32 %v1554, %v1625
        %v1629 = vmul.f32 %v1556, %v1625
        %v1630 = vmul.f32 %v1558, %v1625
        %v1631 = vmul.f32 %v1560, %v1625
        %v1632 = vmul.f32 %v1562, %v1625
        %v1633 = vmul.f32 %v1564, %v1625
        %v1634 = vmul.f32 %v1566, %v1625
        %v1635 = vsel %vm852, %v1627, 0.0
        %v1636 = vrot.slane %v1635, 4
        %v1637 = vadd.f32 %v1635, %v1636
        %v1638 = vrot.slane %v1637, 2
        %v1639 = vadd.f32 %v1637, %v1638
        %v1640 = vrot.slane %v1639, 1
        %v1641 = vadd.f32 %v1639, %v1640
        %v1642 = vsel %vm852, %v1628, 0.0
        %v1643 = vrot.slane %v1642, 4
        %v1644 = vadd.f32 %v1642, %v1643
        %v1645 = vrot.slane %v1644, 2
        %v1646 = vadd.f32 %v1644, %v1645
        %v1647 = vrot.slane %v1646, 1
        %v1648 = vadd.f32 %v1646, %v1647
        %v1649 = vsel %vm852, %v1629, 0.0
        %v1650 = vrot.slane %v1649, 4
        %v1651 = vadd.f32 %v1649, %v1650
        %v1652 = vrot.slane %v1651, 2
        %v1653 = vadd.f32 %v1651, %v1652
        %v1654 = vrot.slane %v1653, 1
        %v1655 = vadd.f32 %v1653, %v1654
        %v1656 = vsel %vm852, %v1630, 0.0
        %v1657 = vrot.slane %v1656, 4
        %v1658 = vadd.f32 %v1656, %v1657
        %v1659 = vrot.slane %v1658, 2
        %v1660 = vadd.f32 %v1658, %v1659
        %v1661 = vrot.slane %v1660, 1
        %v1662 = vadd.f32 %v1660, %v1661
        %v1663 = vsel %vm852, %v1631, 0.0
        %v1664 = vrot.slane %v1663, 4
        %v1665 = vadd.f32 %v1663, %v1664
        %v1666 = vrot.slane %v1665, 2
        %v1667 = vadd.f32 %v1665, %v1666
        %v1668 = vrot.slane %v1667, 1
        %v1669 = vadd.f32 %v1667, %v1668
        %v1670 = vsel %vm852, %v1632, 0.0
        %v1671 = vrot.slane %v1670, 4
        %v1672 = vadd.f32 %v1670, %v1671
        %v1673 = vrot.slane %v1672, 2
        %v1674 = vadd.f32 %v1672, %v1673
        %v1675 = vrot.slane %v1674, 1
        %v1676 = vadd.f32 %v1674, %v1675
        %v1677 = vsel %vm852, %v1633, 0.0
        %v1678 = vrot.slane %v1677, 4
        %v1679 = vadd.f32 %v1677, %v1678
        %v1680 = vrot.slane %v1679, 2
        %v1681 = vadd.f32 %v1679, %v1680
        %v1682 = vrot.slane %v1681, 1
        %v1683 = vadd.f32 %v1681, %v1682
        %v1684 = vsel %vm852, %v1634, 0.0
        %v1685 = vrot.slane %v1684, 4
        %v1686 = vadd.f32 %v1684, %v1685
        %v1687 = vrot.slane %v1686, 2
        %v1688 = vadd.f32 %v1686, %v1687
        %v1689 = vrot.slane %v1688, 1
        %v1690 = vadd.f32 %v1688, %v1689
        %v1691 = vrcp.pop %v1573
        %v1692 = vrcp.pop %v1580
        %v1693 = vrcp.pop %v1587
        %v1694 = vrcp.pop %v1594
        %v1695 = vrcp.pop %v1601
        %v1696 = vrcp.pop %v1608
        %v1697 = vrcp.pop %v1615
        %v1698 = vrcp.pop %v1622
        %v1699 = vmul.f32 %v1641, %v1691
        %v1700 = vmul.f32 %v1648, %v1692
        %v1701 = vmul.f32 %v1655, %v1693
        %v1702 = vmul.f32 %v1662, %v1694
        %v1703 = vmul.f32 %v1669, %v1695
        %v1704 = vmul.f32 %v1676, %v1696
        %v1705 = vmul.f32 %v1683, %v1697
        %v1706 = vmul.f32 %v1690, %v1698
        %v1707 = vadd.f32 %v827, 1.0
        %v1709 = vlaneseq
        %v1710 = vshrl.u32 %v1709, 7
        %v1711 = vsub.s32 0, %v1710
        %v1712 = vrot.slane %v1707, %v1711
        %vm1722 = vcmask 1041409
        %v1723 = vsel %vm1722, %v1700, %v1699
        %vm1724 = vcmask 1042434
        %v1725 = vsel %vm1724, %v1701, %v1723
        %vm1726 = vcmask 1043459
        %v1727 = vsel %vm1726, %v1702, %v1725
        %vm1728 = vcmask 1044484
        %v1729 = vsel %vm1728, %v1703, %v1727
        %vm1730 = vcmask 1045509
        %v1731 = vsel %vm1730, %v1704, %v1729
        %vm1732 = vcmask 1046534
        %v1733 = vsel %vm1732, %v1705, %v1731
        %vm1734 = vcmask 1047559
        %v1735 = vsel %vm1734, %v1706, %v1733
        %1736 = vrot.lane.b32.xlu0 %v1735, 32
        %v1737 = vpop.permute.xlu0 %1736
        %v1739 = vmul.f32 %v1712, %v1737
        %v1741 = vlaneseq
        %v1742 = vshrl.u32 %v1741, 7
        %v1743 = vsub.s32 0, %v1742
        %v1744 = vrot.slane %v827, %v1743
        %1747 = vrot.lane.b32.xlu0 %v1739, 96
        %v1748 = vpop.permute.xlu0 %1747
        %v1750 = vadd.f32 %v1744, %v1748
        %v1751 = vpack.c.bf16 %v1750, %v1750
        %v1752 = vld [vmem:[%s14] sm:$0xf]
        %v1753 = vld [vmem:[%s14 + $0x4] sm:$0xf]
        %v1754 = vld [vmem:[%s14 + $0x8] sm:$0xf]
        %v1755 = vld [vmem:[%s14 + $0xc] sm:$0xf]
        %v1756 = vld [vmem:[%s15] sm:$0x1]
        %v1758 = vlaneseq
        %v1759 = vshrl.u32 %v1758, 7
        %v1760 = vsub.s32 0, %v1759
        %v1761 = vrot.slane %v1756, %v1760
        %v1767 = vunpack.c.l.b16 %v1752
        %v1768 = vunpack.c.l.b16 %v1753
        %v1769 = vunpack.c.l.b16 %v1754
        %v1770 = vunpack.c.l.b16 %v1755
        %v1771 = vpack.c.b16 %v1768, %v1767
        %v1772 = vpack.c.b16 %v1770, %v1769
        %v1776 = vsel %vm852, %v1751, 0
        %1778 = vmatprep.subr.bf16.mxu0 0
        %1779 = vmatpush1.bf16.msra.mxu0 0
        %1780 = vmatprep.subr.bf16.mxu0 0
        %1781 = vmatpush1.bf16.msra.mxu0 0
        %1782 = vmatprep.subr.bf16.mxu0 0
        %1783 = vmatpush1.bf16.msra.mxu0 0
        %1784 = vmatprep.subr.bf16.mxu0 0
        %1785 = vmatpush1.bf16.msra.mxu0 0
        %1786 = vmatprep.subr.bf16.mxu0 0
        %1787 = vmatpush1.bf16.msra.mxu0 0
        %1788 = vmatprep.subr.bf16.mxu0 0
        %1789 = vmatpush1.bf16.msra.mxu0 0
        %1790 = vmatprep.subr.bf16.mxu0 0
        %1791 = vmatpush1.bf16.msra.mxu0 %v1772
        %1792 = vmatprep.subr.bf16.mxu0 0
        %1793 = vmatpush1.bf16.msra.mxu0 %v1771
        %1794 = vmatprep.subr.bf16.mxu0 0
        %1795 = vmatpush2.bf16.msra.mxu0 0
        %1796 = vmatprep.subr.bf16.mxu0 0
        %1797 = vmatpush2.bf16.msra.mxu0 0
        %1798 = vmatprep.subr.bf16.mxu0 0
        %1799 = vmatpush2.bf16.msra.mxu0 0
        %1800 = vmatprep.subr.bf16.mxu0 0
        %1801 = vmatpush2.bf16.msra.mxu0 0
        %1802 = vmatprep.subr.bf16.mxu0 0
        %1803 = vmatpush2.bf16.msra.mxu0 0
        %1804 = vmatprep.subr.bf16.mxu0 0
        %1805 = vmatpush2.bf16.msra.mxu0 0
        %1806 = vmatprep.subr.bf16.mxu0 0
        %1807 = vmatpush2.bf16.msra.mxu0 0
        %1808 = vmatprep.subr.bf16.mxu0 0
        %1809 = vmatpush2.bf16.msra.mxu0 0
        %1810 = vmatprep.mubr.bf16.mxu0 0
        %1811 = vmatmul.mubr.bf16.gmra.mxu0 %v1776
        %v1812 = vpop.f32.mrf.mxu0
        %v1813 = vadd.f32 %v1761, %v1812
        %v1814 = vpop.f32.mrf.mxu0
        %v1815 = vpop.f32.mrf.mxu0
        %v1816 = vpop.f32.mrf.mxu0
        %1817 = vdwg.mxu0
        %1818 = vset.pattern.permute.xlu0 0
        %1819 = vperm.xlu0 %1818, %v825
        %v1820 = vpop.permute.xlu0 %1819
        %v1822 = vmul.f32 %v1813, %v1820
        %1823 = vst.msk [vmem:[%s746] sm:$0xff] %vm852, %v1822
        %v1824 = vsel %vm852, %v815, 0.0
        %v1825 = vrot.slane %v1824, 4
        %v1826 = vadd.f32 %v1824, %v1825
        %v1827 = vrot.slane %v1826, 2
        %v1828 = vadd.f32 %v1826, %v1827
        %v1829 = vrot.slane %v1828, 1
        %v1830 = vadd.f32 %v1828, %v1829
        %v1831 = vsel %vm852, %v815, inf
        %v1832 = vrot.slane %v1831, 4
        %v1833 = vmin.f32 %v1831, %v1832
        %v1834 = vrot.slane %v1833, 2
        %v1835 = vmin.f32 %v1833, %v1834
        %v1836 = vrot.slane %v1835, 1
        %v1837 = vmin.f32 %v1835, %v1836
        %v1838 = vsel %vm852, %v815, -inf
        %v1839 = vrot.slane %v1838, 4
        %v1840 = vmax.f32 %v1838, %v1839
        %v1841 = vrot.slane %v1840, 2
        %v1842 = vmax.f32 %v1840, %v1841
        %v1843 = vrot.slane %v1842, 1
        %v1844 = vmax.f32 %v1842, %v1843
        %v1845 = vmul.f32 %v815, %v815
        %v1846 = vsel %vm852, %v1845, 0.0
        %v1847 = vrot.slane %v1846, 4
        %v1848 = vadd.f32 %v1846, %v1847
        %v1849 = vrot.slane %v1848, 2
        %v1850 = vadd.f32 %v1848, %v1849
        %v1851 = vrot.slane %v1850, 1
        %v1852 = vadd.f32 %v1850, %v1851
        %vm1853 = vcmask 1040384
        %v1854 = vsel %vm1853, %v1830, %v1837
        %vm1855 = vcmask 1041408
        %v1856 = vsel %vm1855, %v1854, %v1844
        %vm1857 = vcmask 1042432
        %v1858 = vsel %vm1857, %v1856, %v1852
        %vm1859 = vcmask 257024
        %1860 = vst.msk [vmem:[%s753] sm:$0xf] %vm1859, %v1858
        %v1861 = vsel %vm983, %v817, 0.0
        %v1862 = vsel %vm983, %v818, 0.0
        %v1863 = vadd.f32 %v1861, %v1862
        %v1864 = vsel %vm983, %v819, 0.0
        %v1865 = vadd.f32 %v1863, %v1864
        %v1866 = vsel %vm983, %v820, 0.0
        %v1867 = vadd.f32 %v1865, %v1866
        %v1868 = vsel %vm983, %v821, 0.0
        %v1869 = vadd.f32 %v1867, %v1868
        %v1870 = vsel %vm983, %v822, 0.0
        %v1871 = vadd.f32 %v1869, %v1870
        %v1872 = vsel %vm983, %v823, 0.0
        %v1873 = vadd.f32 %v1871, %v1872
        %v1874 = vsel %vm983, %v824, 0.0
        %v1875 = vadd.f32 %v1873, %v1874
        %v1876 = vrot.slane %v1875, 4
        %v1877 = vadd.f32 %v1875, %v1876
        %v1878 = vrot.slane %v1877, 2
        %v1879 = vadd.f32 %v1877, %v1878
        %v1880 = vrot.slane %v1879, 1
        %v1881 = vadd.f32 %v1879, %v1880
        %v1882 = vsel %vm983, %v817, inf
        %v1883 = vsel %vm983, %v818, inf
        %v1884 = vsel %vm983, %v819, inf
        %v1885 = vsel %vm983, %v820, inf
        %v1886 = vsel %vm983, %v821, inf
        %v1887 = vmin.f32 %v1882, %v1886
        %v1888 = vsel %vm983, %v822, inf
        %v1889 = vmin.f32 %v1883, %v1888
        %v1890 = vsel %vm983, %v823, inf
        %v1891 = vmin.f32 %v1884, %v1890
        %v1892 = vsel %vm983, %v824, inf
        %v1893 = vmin.f32 %v1885, %v1892
        %v1894 = vmin.f32 %v1887, %v1889
        %v1895 = vmin.f32 %v1891, %v1893
        %v1896 = vmin.f32 %v1894, %v1895
        %v1897 = vrot.slane %v1896, 4
        %v1898 = vmin.f32 %v1896, %v1897
        %v1899 = vrot.slane %v1898, 2
        %v1900 = vmin.f32 %v1898, %v1899
        %v1901 = vrot.slane %v1900, 1
        %v1902 = vmin.f32 %v1900, %v1901
        %v1903 = vsel %vm983, %v817, -inf
        %v1904 = vsel %vm983, %v818, -inf
        %v1905 = vsel %vm983, %v819, -inf
        %v1906 = vsel %vm983, %v820, -inf
        %v1907 = vsel %vm983, %v821, -inf
        %v1908 = vmax.f32 %v1903, %v1907
        %v1909 = vsel %vm983, %v822, -inf
        %v1910 = vmax.f32 %v1904, %v1909
        %v1911 = vsel %vm983, %v823, -inf
        %v1912 = vmax.f32 %v1905, %v1911
        %v1913 = vsel %vm983, %v824, -inf
        %v1914 = vmax.f32 %v1906, %v1913
        %v1915 = vmax.f32 %v1908, %v1910
        %v1916 = vmax.f32 %v1912, %v1914
        %v1917 = vmax.f32 %v1915, %v1916
        %v1918 = vrot.slane %v1917, 4
        %v1919 = vmax.f32 %v1917, %v1918
        %v1920 = vrot.slane %v1919, 2
        %v1921 = vmax.f32 %v1919, %v1920
        %v1922 = vrot.slane %v1921, 1
        %v1923 = vmax.f32 %v1921, %v1922
        %v1924 = vmul.f32 %v817, %v817
        %v1925 = vmul.f32 %v818, %v818
        %v1926 = vmul.f32 %v819, %v819
        %v1927 = vmul.f32 %v820, %v820
        %v1928 = vmul.f32 %v821, %v821
        %v1929 = vmul.f32 %v822, %v822
        %v1930 = vmul.f32 %v823, %v823
        %v1931 = vmul.f32 %v824, %v824
        %v1932 = vsel %vm983, %v1924, 0.0
        %v1933 = vsel %vm983, %v1925, 0.0
        %v1934 = vadd.f32 %v1932, %v1933
        %v1935 = vsel %vm983, %v1926, 0.0
        %v1936 = vadd.f32 %v1934, %v1935
        %v1937 = vsel %vm983, %v1927, 0.0
        %v1938 = vadd.f32 %v1936, %v1937
        %v1939 = vsel %vm983, %v1928, 0.0
        %v1940 = vadd.f32 %v1938, %v1939
        %v1941 = vsel %vm983, %v1929, 0.0
        %v1942 = vadd.f32 %v1940, %v1941
        %v1943 = vsel %vm983, %v1930, 0.0
        %v1944 = vadd.f32 %v1942, %v1943
        %v1945 = vsel %vm983, %v1931, 0.0
        %v1946 = vadd.f32 %v1944, %v1945
        %v1947 = vrot.slane %v1946, 4
        %v1948 = vadd.f32 %v1946, %v1947
        %v1949 = vrot.slane %v1948, 2
        %v1950 = vadd.f32 %v1948, %v1949
        %v1951 = vrot.slane %v1950, 1
        %v1952 = vadd.f32 %v1950, %v1951
        %v1953 = vsel %vm1853, %v1881, %v1902
        %v1954 = vsel %vm1855, %v1953, %v1923
        %v1955 = vsel %vm1857, %v1954, %v1952
        %vm1956 = vcmask 125952
        %1957 = vst.msk [vmem:[%s760] sm:$0xf] %vm1956, %v1955
        %s1958 = smul.u32 8, %s42
        %p1959 = scmp.lt.s32.totalorder %s41, 1
        %s1960 = scalar_select %p1959, %s41, 1
        %p1961 = scmp.lt.s32.totalorder %s1958, 7
        %s1962 = scalar_select %p1961, %s1958, 7
        %s1963 = smul.addr %s1960, 8
        %s1964 = sadd.s32 %s1962, %s1963
        %s1965 = smul.addr %s1964, 8
        %s1966 = scalar_lea.vmem %s16, %s1965
        %s1967 = sand.u32 %s469, 1
        %s1968 = scalar_lea.sflag [#allocation3], %s1967
        %s1969 = sand.u32 %s469, 1
        %s1970 = smul.addr %s1969, 8
        %s1971 = scalar_lea.vmem [#allocation2], %s1970
        %s1972 = sand.u32 %s37, 1
        %s1973 = scalar_lea.sflag [#allocation5], %s1972
        %s1974 = sand.u32 %s497, 1
        %s1975 = smul.addr %s1974, 4
        %s1976 = scalar_lea.vmem [#allocation4], %s1975
        %s1977 = sand.u32 %s37, 1
        %s1978 = scalar_lea.sflag [#allocation5], %s1977
        %s1979 = sand.u32 %s525, 1
        %s1980 = smul.addr %s1979, 4
        %s1981 = scalar_lea.vmem [#allocation6], %s1980
        // Predicated region
        $region85: #{tpu_custom_call.1} parent=83 // pred_check
          %p1982 = pneg %p451
        $region86: #{tpu_custom_call.1} parent=83 // pred_check_branch
          %1984 = sbr.rel (%p1982) target = $region88
        $region87: #{tpu_custom_call.1} parent=83 // pred_region
          %s1985 = smul.u32 8, %s42
        $region88: #{tpu_custom_call.1} parent=83 // pred_fallthru
          _
        // Predicated region
        $region89: #{tpu_custom_call.1} parent=83 // pred_check
          %p1986 = pneg %p479
        $region90: #{tpu_custom_call.1} parent=83 // pred_check_branch
          %1988 = sbr.rel (%p1986) target = $region92
        $region91: #{tpu_custom_call.1} parent=83 // pred_region
          %s1990 = ssub.s32 128, 128
          %1991 = vsyncadd %s1968, %s1990
          %s1992 = sadd.s32 %s42, %s41
          %s1993 = smul.addr %s1992, 128
          %s1994 = scalar_lea.hbm %s17, %s1993
          %s1996 = sshll.u32 %s1971, 4
          %s1997 = int_to_ptr.vmem [resolvable:$true] %s1996
          %1999 = dma.vmem_to_hbm [thread:$0]  %s1997, 128, %s1994, %s1968
        $region92: #{tpu_custom_call.1} parent=83 // pred_fallthru
          _
        // Predicated region
        $region93: #{tpu_custom_call.1} parent=83 // pred_check
          %p2000 = pneg %p507
        $region94: #{tpu_custom_call.1} parent=83 // pred_check_branch
          %2002 = sbr.rel (%p2000) target = $region96
        $region95: #{tpu_custom_call.1} parent=83 // pred_region
          %s2004 = ssub.s32 64, 64
          %2005 = vsyncadd %s1973, %s2004
          %s2006 = sadd.s32 %s42, %s41
          %s2007 = smul.addr %s2006, 64
          %s2008 = scalar_lea.hbm %s18, %s2007
          %s2010 = sshll.u32 %s1976, 4
          %s2011 = int_to_ptr.vmem [resolvable:$true] %s2010
          %2013 = dma.vmem_to_hbm [thread:$0]  %s2011, 64, %s2008, %s1973
        $region96: #{tpu_custom_call.1} parent=83 // pred_fallthru
          _
        // Predicated region
        $region97: #{tpu_custom_call.1} parent=83 // pred_check
          %p2014 = pneg %p535
        $region98: #{tpu_custom_call.1} parent=83 // pred_check_branch
          %2016 = sbr.rel (%p2014) target = $region100
        $region99: #{tpu_custom_call.1} parent=83 // pred_region
          %s2018 = ssub.s32 64, 64
          %2019 = vsyncadd %s1978, %s2018
          %s2020 = sadd.s32 %s42, %s41
          %s2021 = smul.addr %s2020, 64
          %s2022 = scalar_lea.hbm %s19, %s2021
          %s2024 = sshll.u32 %s1981, 4
          %s2025 = int_to_ptr.vmem [resolvable:$true] %s2024
          %2027 = dma.vmem_to_hbm [thread:$0]  %s2025, 64, %s2022, %s1978
        $region100: #{tpu_custom_call.1} parent=83 // pred_fallthru
          _
      $region84: #{tpu_custom_call.1} parent=5 // pred_fallthru
        _
      %p2028 = scmp.le.s32.totalorder 2, %s32
      // Predicated region
      $region101: #{tpu_custom_call.1} parent=5 // pred_check
        %p2029 = pneg %p2028
      $region102: #{tpu_custom_call.1} parent=5 // pred_check_branch
        %2031 = sbr.rel (%p2029) target = $region104
      $region103: #{tpu_custom_call.1} parent=5 // pred_region
        %s2032 = ssub.s32 %s32, 2
        // Predicated region
        $region105: #{tpu_custom_call.1} parent=103 // pred_check
          %p2033 = pneg %p457
        $region106: #{tpu_custom_call.1} parent=103 // pred_check_branch
          %2035 = sbr.rel (%p2033) target = $region108
        $region107: #{tpu_custom_call.1} parent=103 // pred_region
          %s2036 = smul.u32 8, %s44
          %p2037 = scmp.lt.s32.totalorder %s43, 1
          %s2038 = scalar_select %p2037, %s43, 1
          %p2039 = scmp.lt.s32.totalorder %s2036, 7
          %s2040 = scalar_select %p2039, %s2036, 7
          %s2041 = smul.addr %s2038, 8
          %s2042 = sadd.s32 %s2040, %s2041
          %s2043 = smul.addr %s2042, 8
          %s2044 = scalar_lea.vmem %s16, %s2043
        $region108: #{tpu_custom_call.1} parent=103 // pred_fallthru
          _
        // Predicated region
        $region109: #{tpu_custom_call.1} parent=103 // pred_check
          %p2045 = pneg %p485
        $region110: #{tpu_custom_call.1} parent=103 // pred_check_branch
          %2047 = sbr.rel (%p2045) target = $region112
        $region111: #{tpu_custom_call.1} parent=103 // pred_region
          %s2048 = sand.u32 %s470, 1
          %s2049 = scalar_lea.sflag [#allocation3], %s2048
          %s2050 = sand.u32 %s470, 1
          %s2051 = smul.addr %s2050, 8
          %s2052 = scalar_lea.vmem [#allocation2], %s2051
          %2053 = dma.done %s2049, 128
        $region112: #{tpu_custom_call.1} parent=103 // pred_fallthru
          _
        // Predicated region
        $region113: #{tpu_custom_call.1} parent=103 // pred_check
          %p2054 = pneg %p513
        $region114: #{tpu_custom_call.1} parent=103 // pred_check_branch
          %2056 = sbr.rel (%p2054) target = $region116
        $region115: #{tpu_custom_call.1} parent=103 // pred_region
          %s2057 = sand.u32 %s38, 1
          %s2058 = scalar_lea.sflag [#allocation5], %s2057
          %s2059 = sand.u32 %s498, 1
          %s2060 = smul.addr %s2059, 4
          %s2061 = scalar_lea.vmem [#allocation4], %s2060
          %2062 = dma.done %s2058, 64
        $region116: #{tpu_custom_call.1} parent=103 // pred_fallthru
          _
        // Predicated region
        $region117: #{tpu_custom_call.1} parent=103 // pred_check
          %p2063 = pneg %p541
        $region118: #{tpu_custom_call.1} parent=103 // pred_check_branch
          %2065 = sbr.rel (%p2063) target = $region120
        $region119: #{tpu_custom_call.1} parent=103 // pred_region
          %s2066 = sand.u32 %s38, 1
          %s2067 = scalar_lea.sflag [#allocation5], %s2066
          %s2068 = sand.u32 %s526, 1
          %s2069 = smul.addr %s2068, 4
          %s2070 = scalar_lea.vmem [#allocation6], %s2069
          %2071 = dma.done %s2067, 64
        $region120: #{tpu_custom_call.1} parent=103 // pred_fallthru
          _
      $region104: #{tpu_custom_call.1} parent=5 // pred_fallthru
        _
    $region6: #{tpu_custom_call.1} parent=1 // loop_footer
      %s36 = sadd.s32 1, %s32
    $region7: #{tpu_custom_call.1} parent=1 // loop_footer_branch
      %31 = sbr.rel target = $region3
    $region8: #{tpu_custom_call.1} parent=1 // loop_exit
      _
    %2072 = vsyncpa [#allocation3], 1
    %s2073 = scalar_lea.sflag [#allocation3], 1
    %2074 = vsyncpa %s2073, 1
    %2075 = vsyncpa [#allocation5], 1
    %s2076 = scalar_lea.sflag [#allocation5], 1
    %2077 = vsyncpa %s2076, 1

</llo_original>
